<compile_context>
chip_gen: v6e
topology: v6e:2x2x1
jax: 0.10.0
libtpu: 0.0.40
codegen_flags: <defaults>
</compile_context>

<pallas_src>
import functools

import jax
import jax.numpy as jnp
import numpy as np
from jax.experimental import pallas as pl
from jax.experimental.pallas import tpu as pltpu


def _split_gauss_kernel(x_ref, mask_ref, wm_ref, wnl_ref, bm_ref, bnl_ref,
                        z2_ref, logdet_ref, *, W):
    # x_ref:      (bb, 2, Cin, HW) f32; [:, 0] = x1, [:, 1] = x2 (aligned sub-tiles)
    # mask_ref:   (9, HW)          f32; per-tap SAME-padding validity masks
    # wm_ref:     (9, Cin, Cin)    bf16; per-tap weights for m    (exp(lsf) folded in)
    # wnl_ref:    (9, Cin, Cin)    bf16; per-tap weights for -logs (negated, lsf folded)
    # bm_ref:     (Cin, 1)         f32;  bias for m
    # bnl_ref:    (Cin, 1)         f32;  bias for -logs
    # z2_ref:     (bb, Cin, HW)    f32
    # logdet_ref: (bb, 1, 128)     f32 (per-image scalar along one lane row)
    bb = x_ref.shape[0]
    Cin = x_ref.shape[2]
    HW = x_ref.shape[3]

    # Hoisted once per grid step (not per image): tap weights, broadcast masks, biases.
    wm_taps = [wm_ref[t] for t in range(9)]                       # 9 x (Cin, Cin) bf16
    wnl_taps = [wnl_ref[t] for t in range(9)]
    mask_b = [None if t == 4 else
              jnp.broadcast_to(mask_ref[t:t + 1, :], (Cin, HW))   # centre tap is all-ones
              for t in range(9)]
    b_m = jnp.broadcast_to(bm_ref[...], (Cin, HW))
    b_nl = jnp.broadcast_to(bnl_ref[...], (Cin, HW))

    for i in range(bb):                       # static unroll over the block's images
        x1 = x_ref[i, 0]                      # (Cin, HW) f32, aligned
        x2 = x_ref[i, 1]                      # (Cin, HW) f32, aligned

        # Accumulate the conv directly (scratch-free im2col): for tap t = (dy, dx) the
        # SAME-padded neighbourhood gather is a lane rotation (XLU slot) of x1 with
        # out-of-image positions zeroed by the per-tap mask.  Bias folded into init.
        m = b_m
        neglogs = b_nl
        for t in range(9):
            dy, dx = t // 3 - 1, t % 3 - 1
            s = dy * W + dx
            shifted = x1 if s == 0 else pltpu.roll(x1, shift=(-s) % HW, axis=1)
            if t != 4:
                shifted = shifted * mask_b[t]
            patch = shifted.astype(jnp.bfloat16)
            m = m + jnp.dot(wm_taps[t], patch,
                            preferred_element_type=jnp.float32)
            neglogs = neglogs + jnp.dot(wnl_taps[t], patch,
                                        preferred_element_type=jnp.float32)

        z2_ref[i] = ((x2 - m) * jnp.exp(neglogs)).astype(z2_ref.dtype)
        logdet_ref[i] = jnp.full((1, 128), jnp.sum(neglogs), jnp.float32)


def _round_up(v, m):
    return -(-v // m) * m


def _pick_images_per_step(B, Cin, HW):
    """Images per grid step.

    Keeps >= 4 grid steps when possible (>= 2 per v7x TensorCore so the software
    pipeline stays alive), caps the double-buffered block footprint at ~40 MiB (v7x has
    64 MiB physical VMEM) and grows bb towards >= ~1 MiB input DMAs per step, which is
    what reaches the HBM roofline on v5e/v6e.
    """
    cin_pad = _round_up(max(Cin, 1), 8)                # VMEM sublane padding per half
    per_image_block = (2 * cin_pad + cin_pad) * HW * 4  # x (both halves) + z2, 1 buffer
    vmem_budget = 40 << 20
    dma_target = 1 << 20
    best = 1
    for bb in range(1, B + 1):
        if B % bb:
            continue
        if 2 * bb * per_image_block > vmem_budget:      # double-buffered pipeline
            break
        if bb > 1 and B // bb < 4:
            continue                                    # keep >= 4 grid steps
        best = bb
        if bb * 2 * Cin * HW * 4 >= dma_target:         # x1+x2 input DMA big enough
            break
    return best


def split_forward(x, weight, bias, log_scale_factor):
    """Forward of Split(n_channels=C).

    x:                (B, C, H, W)  NCHW
    weight:           (C, C//2, 3, 3)  conv weight, OIHW (nn.Conv2d(C//2, C, 3, pad=1))
    bias:             (C,)
    log_scale_factor: (C, 1, 1)
    Returns (x1, z2, logdet) with x1, z2: (B, C//2, H, W), logdet: (B,)
    """
    B, C, H, W = x.shape
    Cin = C // 2
    HW = H * W

    x1_out = x[:, :Cin]

    # Fold exp(log_scale_factor) into weight/bias.  Output channels 0::2 drive m,
    # 1::2 drive logs; the logs half is negated so the kernel produces -logs directly.
    scale = jnp.exp(log_scale_factor.reshape(C))
    w_eff = weight * scale[:, None, None, None]                    # (C, Cin, 3, 3)
    b_eff = bias * scale                                           # (C,)
    # Per-tap weight stacks, layout (9, Cin_out, Cin_in), tap t = ky*3 + kx.
    wm = jnp.transpose(w_eff[0::2], (2, 3, 0, 1)).reshape(9, Cin, Cin).astype(jnp.bfloat16)
    wnl = (-jnp.transpose(w_eff[1::2], (2, 3, 0, 1))).reshape(9, Cin, Cin).astype(jnp.bfloat16)
    b_m = b_eff[0::2].reshape(Cin, 1).astype(jnp.float32)
    b_nl = (-b_eff[1::2]).reshape(Cin, 1).astype(jnp.float32)
    # TODO(synk): if bf16 MXU operands prove too lossy for flow training (logdet sums
    # Cin*H*W terms), switch the -logs tap dots to an f32 matmul path.

    # Compile-time per-tap validity masks of the SAME (pad=1) conv over flattened
    # spatial (numpy constant, no extra XLA op).
    p = np.arange(HW)
    yy, xx = p // W, p % W
    masks = np.stack([
        (((yy + dy) >= 0) & ((yy + dy) < H) & ((xx + dx) >= 0) & ((xx + dx) < W))
        for dy in (-1, 0, 1) for dx in (-1, 0, 1)
    ]).astype(np.float32)                                          # (9, HW)
    masks = jnp.asarray(masks)

    # Free (bitcast) reshape exposing the two channel halves as an explicit axis so the
    # kernel's x1/x2 views start at sublane 0 even when Cin % 8 != 0 — no unaligned
    # slices and no wrapper-side HBM copy of x2.
    x_r = x.reshape(B, 2, Cin, HW).astype(jnp.float32)

    bb = _pick_images_per_step(B, Cin, HW)
    grid = (B // bb,)

    kernel = functools.partial(_split_gauss_kernel, W=W)
    z2_flat, logdet_rows = pl.pallas_call(
        kernel,
        out_shape=(
            jax.ShapeDtypeStruct((B, Cin, HW), jnp.float32),
            jax.ShapeDtypeStruct((B, 1, 128), jnp.float32),
        ),
        grid_spec=pltpu.PrefetchScalarGridSpec(
            num_scalar_prefetch=0,
            grid=grid,
            in_specs=[
                pl.BlockSpec((bb, 2, Cin, HW), lambda b: (b, 0, 0, 0)),
                pl.BlockSpec((9, HW), lambda b: (0, 0)),
                pl.BlockSpec((9, Cin, Cin), lambda b: (0, 0, 0)),
                pl.BlockSpec((9, Cin, Cin), lambda b: (0, 0, 0)),
                pl.BlockSpec((Cin, 1), lambda b: (0, 0)),
                pl.BlockSpec((Cin, 1), lambda b: (0, 0)),
            ],
            out_specs=[
                pl.BlockSpec((bb, Cin, HW), lambda b: (b, 0, 0)),
                pl.BlockSpec((bb, 1, 128), lambda b: (b, 0, 0)),
            ],
        ),
        compiler_params=pltpu.CompilerParams(
            dimension_semantics=("parallel",),
            # Raise v5e's 16 MiB default scoped VMEM; block picker caps the footprint
            # at ~40 MiB so this also stays within v7x's 64 MiB physical VMEM.
            vmem_limit_bytes=48 * 1024 * 1024),
    )(x_r, masks, wm, wnl, b_m, b_nl)
    # TODO(synk): for production Glow sizes where bb*C*HW blocks approach the VMEM
    # budget, add row-strip spatial tiling (1-row halo) instead of shrinking bb.

    z2 = z2_flat.reshape(B, Cin, H, W)
    logdet = logdet_rows[:, 0, 0]
    return x1_out, z2, logdet


if __name__ == "__main__":
    key = jax.random.PRNGKey(0)
    B, C, H, W = 2, 4, 16, 16
    kx, kw, kb, kl = jax.random.split(key, 4)

    x = jax.random.normal(kx, (B, C, H, W), jnp.float32)
    # NOTE: the PyTorch module zero-initializes conv weight/bias and log_scale_factor
    # (identity init); use small non-zero values instead so the matmul path is exercised.
    weight = 0.1 * jax.random.normal(kw, (C, C // 2, 3, 3), jnp.float32)
    bias = 0.1 * jax.random.normal(kb, (C,), jnp.float32)
    log_scale_factor = 0.1 * jax.random.normal(kl, (C, 1, 1), jnp.float32)

    x1, z2, logdet = jax.jit(split_forward)(x, weight, bias, log_scale_factor)
    jax.block_until_ready((x1, z2, logdet))

    # pure-JAX reference (same math as the PyTorch module, f32 throughout)
    x1_r, x2_r = x[:, :C // 2], x[:, C // 2:]
    h = jax.lax.conv_general_dilated(
        x1_r, weight, window_strides=(1, 1), padding="SAME",
        dimension_numbers=("NCHW", "OIHW", "NCHW")) + bias[None, :, None, None]
    h = h * jnp.exp(log_scale_factor.reshape(C))[None, :, None, None]
    m_r, logs_r = h[:, 0::2], h[:, 1::2]
    z2_r = (x2_r - m_r) * jnp.exp(-logs_r)
    logdet_r = -logs_r.sum(axis=(1, 2, 3))

    # Tolerances account for bf16 MXU operands (f32 accumulation); the logdet error
    # additionally accumulates over the H*W*Cin reduction.
    assert jnp.allclose(x1, x1_r)
    assert jnp.allclose(z2, z2_r, atol=3e-2, rtol=3e-2), \
        float(jnp.max(jnp.abs(z2 - z2_r)))
    assert jnp.allclose(logdet, logdet_r, atol=0.3, rtol=1e-2), \
        float(jnp.max(jnp.abs(logdet - logdet_r)))
    print("KERNEL_OK")
</pallas_src>

<mosaic_0001>
module attributes {stable_mosaic.version = 11 : i64} {
  func.func @_split_gauss_kernel(%arg0: i32, %arg1: memref<1x2x2x256xf32, #tpu.memory_space<vmem>>, %arg2: memref<9x256xf32, #tpu.memory_space<vmem>>, %arg3: memref<9x2x2xbf16, #tpu.memory_space<vmem>>, %arg4: memref<9x2x2xbf16, #tpu.memory_space<vmem>>, %arg5: memref<2x1xf32, #tpu.memory_space<vmem>>, %arg6: memref<2x1xf32, #tpu.memory_space<vmem>>, %arg7: memref<1x2x256xf32, #tpu.memory_space<vmem>>, %arg8: memref<1x1x128xf32, #tpu.memory_space<vmem>>) attributes {dimension_semantics = [#tpu.dimension_semantics<parallel>], iteration_bounds = array<i64: 2>, scalar_prefetch = 0 : i64, scratch_operands = 0 : i64, tpu.core_type = #tpu.core_type<tc>, window_params = [{transform_indices = @transform_0, window_bounds = array<i64: 1, 2, 2, 256>}, {pipeline_mode = #tpu.pipeline_mode<synchronous>, transform_indices = @transform_1, window_bounds = array<i64: 9, 256>}, {pipeline_mode = #tpu.pipeline_mode<synchronous>, transform_indices = @transform_2, window_bounds = array<i64: 9, 2, 2>}, {pipeline_mode = #tpu.pipeline_mode<synchronous>, transform_indices = @transform_3, window_bounds = array<i64: 9, 2, 2>}, {pipeline_mode = #tpu.pipeline_mode<synchronous>, transform_indices = @transform_4, window_bounds = array<i64: 2, 1>}, {pipeline_mode = #tpu.pipeline_mode<synchronous>, transform_indices = @transform_5, window_bounds = array<i64: 2, 1>}, {transform_indices = @transform_6, window_bounds = array<i64: 1, 2, 256>}, {transform_indices = @transform_7, window_bounds = array<i64: 1, 1, 128>}]} {
    %c0 = arith.constant 0 : index
    %c0_0 = arith.constant 0 : index
    %c0_1 = arith.constant 0 : index
    %0 = vector.load %arg3[%c0, %c0_0, %c0_1] : memref<9x2x2xbf16, #tpu.memory_space<vmem>>, vector<1x2x2xbf16>
    %1 = vector.shape_cast %0 : vector<1x2x2xbf16> to vector<2x2xbf16>
    %c1 = arith.constant 1 : index
    %c0_2 = arith.constant 0 : index
    %c0_3 = arith.constant 0 : index
    %2 = vector.load %arg3[%c1, %c0_2, %c0_3] : memref<9x2x2xbf16, #tpu.memory_space<vmem>>, vector<1x2x2xbf16>
    %3 = vector.shape_cast %2 : vector<1x2x2xbf16> to vector<2x2xbf16>
    %c2 = arith.constant 2 : index
    %c0_4 = arith.constant 0 : index
    %c0_5 = arith.constant 0 : index
    %4 = vector.load %arg3[%c2, %c0_4, %c0_5] : memref<9x2x2xbf16, #tpu.memory_space<vmem>>, vector<1x2x2xbf16>
    %5 = vector.shape_cast %4 : vector<1x2x2xbf16> to vector<2x2xbf16>
    %c3 = arith.constant 3 : index
    %c0_6 = arith.constant 0 : index
    %c0_7 = arith.constant 0 : index
    %6 = vector.load %arg3[%c3, %c0_6, %c0_7] : memref<9x2x2xbf16, #tpu.memory_space<vmem>>, vector<1x2x2xbf16>
    %7 = vector.shape_cast %6 : vector<1x2x2xbf16> to vector<2x2xbf16>
    %c4 = arith.constant 4 : index
    %c0_8 = arith.constant 0 : index
    %c0_9 = arith.constant 0 : index
    %8 = vector.load %arg3[%c4, %c0_8, %c0_9] : memref<9x2x2xbf16, #tpu.memory_space<vmem>>, vector<1x2x2xbf16>
    %9 = vector.shape_cast %8 : vector<1x2x2xbf16> to vector<2x2xbf16>
    %c5 = arith.constant 5 : index
    %c0_10 = arith.constant 0 : index
    %c0_11 = arith.constant 0 : index
    %10 = vector.load %arg3[%c5, %c0_10, %c0_11] : memref<9x2x2xbf16, #tpu.memory_space<vmem>>, vector<1x2x2xbf16>
    %11 = vector.shape_cast %10 : vector<1x2x2xbf16> to vector<2x2xbf16>
    %c6 = arith.constant 6 : index
    %c0_12 = arith.constant 0 : index
    %c0_13 = arith.constant 0 : index
    %12 = vector.load %arg3[%c6, %c0_12, %c0_13] : memref<9x2x2xbf16, #tpu.memory_space<vmem>>, vector<1x2x2xbf16>
    %13 = vector.shape_cast %12 : vector<1x2x2xbf16> to vector<2x2xbf16>
    %c7 = arith.constant 7 : index
    %c0_14 = arith.constant 0 : index
    %c0_15 = arith.constant 0 : index
    %14 = vector.load %arg3[%c7, %c0_14, %c0_15] : memref<9x2x2xbf16, #tpu.memory_space<vmem>>, vector<1x2x2xbf16>
    %15 = vector.shape_cast %14 : vector<1x2x2xbf16> to vector<2x2xbf16>
    %c8 = arith.constant 8 : index
    %c0_16 = arith.constant 0 : index
    %c0_17 = arith.constant 0 : index
    %16 = vector.load %arg3[%c8, %c0_16, %c0_17] : memref<9x2x2xbf16, #tpu.memory_space<vmem>>, vector<1x2x2xbf16>
    %17 = vector.shape_cast %16 : vector<1x2x2xbf16> to vector<2x2xbf16>
    %c0_18 = arith.constant 0 : index
    %c0_19 = arith.constant 0 : index
    %c0_20 = arith.constant 0 : index
    %18 = vector.load %arg4[%c0_18, %c0_19, %c0_20] : memref<9x2x2xbf16, #tpu.memory_space<vmem>>, vector<1x2x2xbf16>
    %19 = vector.shape_cast %18 : vector<1x2x2xbf16> to vector<2x2xbf16>
    %c1_21 = arith.constant 1 : index
    %c0_22 = arith.constant 0 : index
    %c0_23 = arith.constant 0 : index
    %20 = vector.load %arg4[%c1_21, %c0_22, %c0_23] : memref<9x2x2xbf16, #tpu.memory_space<vmem>>, vector<1x2x2xbf16>
    %21 = vector.shape_cast %20 : vector<1x2x2xbf16> to vector<2x2xbf16>
    %c2_24 = arith.constant 2 : index
    %c0_25 = arith.constant 0 : index
    %c0_26 = arith.constant 0 : index
    %22 = vector.load %arg4[%c2_24, %c0_25, %c0_26] : memref<9x2x2xbf16, #tpu.memory_space<vmem>>, vector<1x2x2xbf16>
    %23 = vector.shape_cast %22 : vector<1x2x2xbf16> to vector<2x2xbf16>
    %c3_27 = arith.constant 3 : index
    %c0_28 = arith.constant 0 : index
    %c0_29 = arith.constant 0 : index
    %24 = vector.load %arg4[%c3_27, %c0_28, %c0_29] : memref<9x2x2xbf16, #tpu.memory_space<vmem>>, vector<1x2x2xbf16>
    %25 = vector.shape_cast %24 : vector<1x2x2xbf16> to vector<2x2xbf16>
    %c4_30 = arith.constant 4 : index
    %c0_31 = arith.constant 0 : index
    %c0_32 = arith.constant 0 : index
    %26 = vector.load %arg4[%c4_30, %c0_31, %c0_32] : memref<9x2x2xbf16, #tpu.memory_space<vmem>>, vector<1x2x2xbf16>
    %27 = vector.shape_cast %26 : vector<1x2x2xbf16> to vector<2x2xbf16>
    %c5_33 = arith.constant 5 : index
    %c0_34 = arith.constant 0 : index
    %c0_35 = arith.constant 0 : index
    %28 = vector.load %arg4[%c5_33, %c0_34, %c0_35] : memref<9x2x2xbf16, #tpu.memory_space<vmem>>, vector<1x2x2xbf16>
    %29 = vector.shape_cast %28 : vector<1x2x2xbf16> to vector<2x2xbf16>
    %c6_36 = arith.constant 6 : index
    %c0_37 = arith.constant 0 : index
    %c0_38 = arith.constant 0 : index
    %30 = vector.load %arg4[%c6_36, %c0_37, %c0_38] : memref<9x2x2xbf16, #tpu.memory_space<vmem>>, vector<1x2x2xbf16>
    %31 = vector.shape_cast %30 : vector<1x2x2xbf16> to vector<2x2xbf16>
    %c7_39 = arith.constant 7 : index
    %c0_40 = arith.constant 0 : index
    %c0_41 = arith.constant 0 : index
    %32 = vector.load %arg4[%c7_39, %c0_40, %c0_41] : memref<9x2x2xbf16, #tpu.memory_space<vmem>>, vector<1x2x2xbf16>
    %33 = vector.shape_cast %32 : vector<1x2x2xbf16> to vector<2x2xbf16>
    %c8_42 = arith.constant 8 : index
    %c0_43 = arith.constant 0 : index
    %c0_44 = arith.constant 0 : index
    %34 = vector.load %arg4[%c8_42, %c0_43, %c0_44] : memref<9x2x2xbf16, #tpu.memory_space<vmem>>, vector<1x2x2xbf16>
    %35 = vector.shape_cast %34 : vector<1x2x2xbf16> to vector<2x2xbf16>
    %c0_45 = arith.constant 0 : index
    %c0_46 = arith.constant 0 : index
    %36 = vector.load %arg2[%c0_45, %c0_46] : memref<9x256xf32, #tpu.memory_space<vmem>>, vector<1x256xf32>
    %37 = vector.shape_cast %36 : vector<1x256xf32> to vector<1x256xf32>
    %38 = vector.broadcast %37 : vector<1x256xf32> to vector<2x256xf32>
    %c1_47 = arith.constant 1 : index
    %c0_48 = arith.constant 0 : index
    %39 = vector.load %arg2[%c1_47, %c0_48] : memref<9x256xf32, #tpu.memory_space<vmem>>, vector<1x256xf32>
    %40 = vector.shape_cast %39 : vector<1x256xf32> to vector<1x256xf32>
    %41 = vector.broadcast %40 : vector<1x256xf32> to vector<2x256xf32>
    %c2_49 = arith.constant 2 : index
    %c0_50 = arith.constant 0 : index
    %42 = vector.load %arg2[%c2_49, %c0_50] : memref<9x256xf32, #tpu.memory_space<vmem>>, vector<1x256xf32>
    %43 = vector.shape_cast %42 : vector<1x256xf32> to vector<1x256xf32>
    %44 = vector.broadcast %43 : vector<1x256xf32> to vector<2x256xf32>
    %c3_51 = arith.constant 3 : index
    %c0_52 = arith.constant 0 : index
    %45 = vector.load %arg2[%c3_51, %c0_52] : memref<9x256xf32, #tpu.memory_space<vmem>>, vector<1x256xf32>
    %46 = vector.shape_cast %45 : vector<1x256xf32> to vector<1x256xf32>
    %47 = vector.broadcast %46 : vector<1x256xf32> to vector<2x256xf32>
    %c5_53 = arith.constant 5 : index
    %c0_54 = arith.constant 0 : index
    %48 = vector.load %arg2[%c5_53, %c0_54] : memref<9x256xf32, #tpu.memory_space<vmem>>, vector<1x256xf32>
    %49 = vector.shape_cast %48 : vector<1x256xf32> to vector<1x256xf32>
    %50 = vector.broadcast %49 : vector<1x256xf32> to vector<2x256xf32>
    %c6_55 = arith.constant 6 : index
    %c0_56 = arith.constant 0 : index
    %51 = vector.load %arg2[%c6_55, %c0_56] : memref<9x256xf32, #tpu.memory_space<vmem>>, vector<1x256xf32>
    %52 = vector.shape_cast %51 : vector<1x256xf32> to vector<1x256xf32>
    %53 = vector.broadcast %52 : vector<1x256xf32> to vector<2x256xf32>
    %c7_57 = arith.constant 7 : index
    %c0_58 = arith.constant 0 : index
    %54 = vector.load %arg2[%c7_57, %c0_58] : memref<9x256xf32, #tpu.memory_space<vmem>>, vector<1x256xf32>
    %55 = vector.shape_cast %54 : vector<1x256xf32> to vector<1x256xf32>
    %56 = vector.broadcast %55 : vector<1x256xf32> to vector<2x256xf32>
    %c8_59 = arith.constant 8 : index
    %c0_60 = arith.constant 0 : index
    %57 = vector.load %arg2[%c8_59, %c0_60] : memref<9x256xf32, #tpu.memory_space<vmem>>, vector<1x256xf32>
    %58 = vector.shape_cast %57 : vector<1x256xf32> to vector<1x256xf32>
    %59 = vector.broadcast %58 : vector<1x256xf32> to vector<2x256xf32>
    %c0_61 = arith.constant 0 : index
    %c0_62 = arith.constant 0 : index
    %60 = vector.load %arg5[%c0_61, %c0_62] : memref<2x1xf32, #tpu.memory_space<vmem>>, vector<2x1xf32>
    %61 = vector.shape_cast %60 : vector<2x1xf32> to vector<2x1xf32>
    %62 = vector.broadcast %61 : vector<2x1xf32> to vector<2x256xf32>
    %c0_63 = arith.constant 0 : index
    %c0_64 = arith.constant 0 : index
    %63 = vector.load %arg6[%c0_63, %c0_64] : memref<2x1xf32, #tpu.memory_space<vmem>>, vector<2x1xf32>
    %64 = vector.shape_cast %63 : vector<2x1xf32> to vector<2x1xf32>
    %65 = vector.broadcast %64 : vector<2x1xf32> to vector<2x256xf32>
    %c0_65 = arith.constant 0 : index
    %c0_66 = arith.constant 0 : index
    %c0_67 = arith.constant 0 : index
    %c0_68 = arith.constant 0 : index
    %66 = vector.load %arg1[%c0_65, %c0_66, %c0_67, %c0_68] : memref<1x2x2x256xf32, #tpu.memory_space<vmem>>, vector<1x1x2x256xf32>
    %67 = vector.shape_cast %66 : vector<1x1x2x256xf32> to vector<2x256xf32>
    %c0_69 = arith.constant 0 : index
    %c1_70 = arith.constant 1 : index
    %c0_71 = arith.constant 0 : index
    %c0_72 = arith.constant 0 : index
    %68 = vector.load %arg1[%c0_69, %c1_70, %c0_71, %c0_72] : memref<1x2x2x256xf32, #tpu.memory_space<vmem>>, vector<1x1x2x256xf32>
    %69 = vector.shape_cast %68 : vector<1x1x2x256xf32> to vector<2x256xf32>
    %c17_i32 = arith.constant 17 : i32
    %70 = tpu.dynamic_rotate %67 by %c17_i32 dim 1 : vector<2x256xf32>, i32 -> vector<2x256xf32>
    %71 = arith.mulf %70, %38 : vector<2x256xf32>
    %72 = arith.truncf %71 : vector<2x256xf32> to vector<2x256xbf16>
    %cst = arith.constant dense<0.000000e+00> : vector<2x256xf32>
    %73 = tpu.matmul %1, %72, %cst {dimension_numbers = #tpu.dot_dimension_numbers<[1], [0], [0], [1], [0, 0, 1, 1], [], []>} : vector<2x2xbf16>, vector<2x256xbf16>, vector<2x256xf32> -> vector<2x256xf32>
    %74 = arith.addf %62, %73 : vector<2x256xf32>
    %cst_73 = arith.constant dense<0.000000e+00> : vector<2x256xf32>
    %75 = tpu.matmul %19, %72, %cst_73 {dimension_numbers = #tpu.dot_dimension_numbers<[1], [0], [0], [1], [0, 0, 1, 1], [], []>} : vector<2x2xbf16>, vector<2x256xbf16>, vector<2x256xf32> -> vector<2x256xf32>
    %76 = arith.addf %65, %75 : vector<2x256xf32>
    %c16_i32 = arith.constant 16 : i32
    %77 = tpu.dynamic_rotate %67 by %c16_i32 dim 1 : vector<2x256xf32>, i32 -> vector<2x256xf32>
    %78 = arith.mulf %77, %41 : vector<2x256xf32>
    %79 = arith.truncf %78 : vector<2x256xf32> to vector<2x256xbf16>
    %cst_74 = arith.constant dense<0.000000e+00> : vector<2x256xf32>
    %80 = tpu.matmul %3, %79, %cst_74 {dimension_numbers = #tpu.dot_dimension_numbers<[1], [0], [0], [1], [0, 0, 1, 1], [], []>} : vector<2x2xbf16>, vector<2x256xbf16>, vector<2x256xf32> -> vector<2x256xf32>
    %81 = arith.addf %74, %80 : vector<2x256xf32>
    %cst_75 = arith.constant dense<0.000000e+00> : vector<2x256xf32>
    %82 = tpu.matmul %21, %79, %cst_75 {dimension_numbers = #tpu.dot_dimension_numbers<[1], [0], [0], [1], [0, 0, 1, 1], [], []>} : vector<2x2xbf16>, vector<2x256xbf16>, vector<2x256xf32> -> vector<2x256xf32>
    %83 = arith.addf %76, %82 : vector<2x256xf32>
    %c15_i32 = arith.constant 15 : i32
    %84 = tpu.dynamic_rotate %67 by %c15_i32 dim 1 : vector<2x256xf32>, i32 -> vector<2x256xf32>
    %85 = arith.mulf %84, %44 : vector<2x256xf32>
    %86 = arith.truncf %85 : vector<2x256xf32> to vector<2x256xbf16>
    %cst_76 = arith.constant dense<0.000000e+00> : vector<2x256xf32>
    %87 = tpu.matmul %5, %86, %cst_76 {dimension_numbers = #tpu.dot_dimension_numbers<[1], [0], [0], [1], [0, 0, 1, 1], [], []>} : vector<2x2xbf16>, vector<2x256xbf16>, vector<2x256xf32> -> vector<2x256xf32>
    %88 = arith.addf %81, %87 : vector<2x256xf32>
    %cst_77 = arith.constant dense<0.000000e+00> : vector<2x256xf32>
    %89 = tpu.matmul %23, %86, %cst_77 {dimension_numbers = #tpu.dot_dimension_numbers<[1], [0], [0], [1], [0, 0, 1, 1], [], []>} : vector<2x2xbf16>, vector<2x256xbf16>, vector<2x256xf32> -> vector<2x256xf32>
    %90 = arith.addf %83, %89 : vector<2x256xf32>
    %c1_i32 = arith.constant 1 : i32
    %91 = tpu.dynamic_rotate %67 by %c1_i32 dim 1 : vector<2x256xf32>, i32 -> vector<2x256xf32>
    %92 = arith.mulf %91, %47 : vector<2x256xf32>
    %93 = arith.truncf %92 : vector<2x256xf32> to vector<2x256xbf16>
    %cst_78 = arith.constant dense<0.000000e+00> : vector<2x256xf32>
    %94 = tpu.matmul %7, %93, %cst_78 {dimension_numbers = #tpu.dot_dimension_numbers<[1], [0], [0], [1], [0, 0, 1, 1], [], []>} : vector<2x2xbf16>, vector<2x256xbf16>, vector<2x256xf32> -> vector<2x256xf32>
    %95 = arith.addf %88, %94 : vector<2x256xf32>
    %cst_79 = arith.constant dense<0.000000e+00> : vector<2x256xf32>
    %96 = tpu.matmul %25, %93, %cst_79 {dimension_numbers = #tpu.dot_dimension_numbers<[1], [0], [0], [1], [0, 0, 1, 1], [], []>} : vector<2x2xbf16>, vector<2x256xbf16>, vector<2x256xf32> -> vector<2x256xf32>
    %97 = arith.addf %90, %96 : vector<2x256xf32>
    %98 = arith.truncf %67 : vector<2x256xf32> to vector<2x256xbf16>
    %cst_80 = arith.constant dense<0.000000e+00> : vector<2x256xf32>
    %99 = tpu.matmul %9, %98, %cst_80 {dimension_numbers = #tpu.dot_dimension_numbers<[1], [0], [0], [1], [0, 0, 1, 1], [], []>} : vector<2x2xbf16>, vector<2x256xbf16>, vector<2x256xf32> -> vector<2x256xf32>
    %100 = arith.addf %95, %99 : vector<2x256xf32>
    %cst_81 = arith.constant dense<0.000000e+00> : vector<2x256xf32>
    %101 = tpu.matmul %27, %98, %cst_81 {dimension_numbers = #tpu.dot_dimension_numbers<[1], [0], [0], [1], [0, 0, 1, 1], [], []>} : vector<2x2xbf16>, vector<2x256xbf16>, vector<2x256xf32> -> vector<2x256xf32>
    %102 = arith.addf %97, %101 : vector<2x256xf32>
    %c255_i32 = arith.constant 255 : i32
    %103 = tpu.dynamic_rotate %67 by %c255_i32 dim 1 : vector<2x256xf32>, i32 -> vector<2x256xf32>
    %104 = arith.mulf %103, %50 : vector<2x256xf32>
    %105 = arith.truncf %104 : vector<2x256xf32> to vector<2x256xbf16>
    %cst_82 = arith.constant dense<0.000000e+00> : vector<2x256xf32>
    %106 = tpu.matmul %11, %105, %cst_82 {dimension_numbers = #tpu.dot_dimension_numbers<[1], [0], [0], [1], [0, 0, 1, 1], [], []>} : vector<2x2xbf16>, vector<2x256xbf16>, vector<2x256xf32> -> vector<2x256xf32>
    %107 = arith.addf %100, %106 : vector<2x256xf32>
    %cst_83 = arith.constant dense<0.000000e+00> : vector<2x256xf32>
    %108 = tpu.matmul %29, %105, %cst_83 {dimension_numbers = #tpu.dot_dimension_numbers<[1], [0], [0], [1], [0, 0, 1, 1], [], []>} : vector<2x2xbf16>, vector<2x256xbf16>, vector<2x256xf32> -> vector<2x256xf32>
    %109 = arith.addf %102, %108 : vector<2x256xf32>
    %c241_i32 = arith.constant 241 : i32
    %110 = tpu.dynamic_rotate %67 by %c241_i32 dim 1 : vector<2x256xf32>, i32 -> vector<2x256xf32>
    %111 = arith.mulf %110, %53 : vector<2x256xf32>
    %112 = arith.truncf %111 : vector<2x256xf32> to vector<2x256xbf16>
    %cst_84 = arith.constant dense<0.000000e+00> : vector<2x256xf32>
    %113 = tpu.matmul %13, %112, %cst_84 {dimension_numbers = #tpu.dot_dimension_numbers<[1], [0], [0], [1], [0, 0, 1, 1], [], []>} : vector<2x2xbf16>, vector<2x256xbf16>, vector<2x256xf32> -> vector<2x256xf32>
    %114 = arith.addf %107, %113 : vector<2x256xf32>
    %cst_85 = arith.constant dense<0.000000e+00> : vector<2x256xf32>
    %115 = tpu.matmul %31, %112, %cst_85 {dimension_numbers = #tpu.dot_dimension_numbers<[1], [0], [0], [1], [0, 0, 1, 1], [], []>} : vector<2x2xbf16>, vector<2x256xbf16>, vector<2x256xf32> -> vector<2x256xf32>
    %116 = arith.addf %109, %115 : vector<2x256xf32>
    %c240_i32 = arith.constant 240 : i32
    %117 = tpu.dynamic_rotate %67 by %c240_i32 dim 1 : vector<2x256xf32>, i32 -> vector<2x256xf32>
    %118 = arith.mulf %117, %56 : vector<2x256xf32>
    %119 = arith.truncf %118 : vector<2x256xf32> to vector<2x256xbf16>
    %cst_86 = arith.constant dense<0.000000e+00> : vector<2x256xf32>
    %120 = tpu.matmul %15, %119, %cst_86 {dimension_numbers = #tpu.dot_dimension_numbers<[1], [0], [0], [1], [0, 0, 1, 1], [], []>} : vector<2x2xbf16>, vector<2x256xbf16>, vector<2x256xf32> -> vector<2x256xf32>
    %121 = arith.addf %114, %120 : vector<2x256xf32>
    %cst_87 = arith.constant dense<0.000000e+00> : vector<2x256xf32>
    %122 = tpu.matmul %33, %119, %cst_87 {dimension_numbers = #tpu.dot_dimension_numbers<[1], [0], [0], [1], [0, 0, 1, 1], [], []>} : vector<2x2xbf16>, vector<2x256xbf16>, vector<2x256xf32> -> vector<2x256xf32>
    %123 = arith.addf %116, %122 : vector<2x256xf32>
    %c239_i32 = arith.constant 239 : i32
    %124 = tpu.dynamic_rotate %67 by %c239_i32 dim 1 : vector<2x256xf32>, i32 -> vector<2x256xf32>
    %125 = arith.mulf %124, %59 : vector<2x256xf32>
    %126 = arith.truncf %125 : vector<2x256xf32> to vector<2x256xbf16>
    %cst_88 = arith.constant dense<0.000000e+00> : vector<2x256xf32>
    %127 = tpu.matmul %17, %126, %cst_88 {dimension_numbers = #tpu.dot_dimension_numbers<[1], [0], [0], [1], [0, 0, 1, 1], [], []>} : vector<2x2xbf16>, vector<2x256xbf16>, vector<2x256xf32> -> vector<2x256xf32>
    %128 = arith.addf %121, %127 : vector<2x256xf32>
    %cst_89 = arith.constant dense<0.000000e+00> : vector<2x256xf32>
    %129 = tpu.matmul %35, %126, %cst_89 {dimension_numbers = #tpu.dot_dimension_numbers<[1], [0], [0], [1], [0, 0, 1, 1], [], []>} : vector<2x2xbf16>, vector<2x256xbf16>, vector<2x256xf32> -> vector<2x256xf32>
    %130 = arith.addf %123, %129 : vector<2x256xf32>
    %131 = arith.subf %69, %128 : vector<2x256xf32>
    %132 = math.exp %130 : vector<2x256xf32>
    %133 = arith.mulf %131, %132 : vector<2x256xf32>
    %c0_90 = arith.constant 0 : index
    %c0_91 = arith.constant 0 : index
    %c0_92 = arith.constant 0 : index
    %134 = vector.load %arg7[%c0_90, %c0_91, %c0_92] : memref<1x2x256xf32, #tpu.memory_space<vmem>>, vector<1x2x256xf32>
    %135 = vector.shape_cast %134 : vector<1x2x256xf32> to vector<2x256xf32>
    %136 = vector.shape_cast %133 : vector<2x256xf32> to vector<1x2x256xf32>
    tpu.vector_store %arg7[%c0_90, %c0_91, %c0_92], %136 {strides = array<i32>} : memref<1x2x256xf32, #tpu.memory_space<vmem>>, vector<1x2x256xf32>,
    %137 = vector.shape_cast %130 : vector<2x256xf32> to vector<1x2x256xf32>
    %cst_93 = arith.constant dense<0.000000e+00> : vector<1xf32>
    %138 = vector.multi_reduction <add>, %137, %cst_93 [1, 2] : vector<1x2x256xf32> to vector<1xf32>
    %139 = vector.shape_cast %138 : vector<1xf32> to vector<1x1x1xf32>
    %140 = vector.extract %139[0, 0, 0] : f32 from vector<1x1x1xf32>
    %141 = vector.broadcast %140 : f32 to vector<1x128xf32>
    %c0_94 = arith.constant 0 : index
    %c0_95 = arith.constant 0 : index
    %c0_96 = arith.constant 0 : index
    %142 = vector.load %arg8[%c0_94, %c0_95, %c0_96] : memref<1x1x128xf32, #tpu.memory_space<vmem>>, vector<1x1x128xf32>
    %143 = vector.shape_cast %142 : vector<1x1x128xf32> to vector<1x128xf32>
    %144 = vector.shape_cast %141 : vector<1x128xf32> to vector<1x1x128xf32>
    tpu.vector_store %arg8[%c0_94, %c0_95, %c0_96], %144 {strides = array<i32>} : memref<1x1x128xf32, #tpu.memory_space<vmem>>, vector<1x1x128xf32>,
    return
  }
  func.func @transform_0(%arg0: i32) -> (i32, i32, i32, i32) {
    %c0_i32 = arith.constant 0 : i32
    %c0_i32_0 = arith.constant 0 : i32
    %c0_i32_1 = arith.constant 0 : i32
    %c0_i32_2 = arith.constant 0 : i32
    return %arg0, %c0_i32, %c0_i32_0, %c0_i32_1 : i32, i32, i32, i32
  }
  func.func @transform_1(%arg0: i32) -> (i32, i32) {
    %c0_i32 = arith.constant 0 : i32
    %c0_i32_0 = arith.constant 0 : i32
    %c0_i32_1 = arith.constant 0 : i32
    return %c0_i32, %c0_i32_0 : i32, i32
  }
  func.func @transform_2(%arg0: i32) -> (i32, i32, i32) {
    %c0_i32 = arith.constant 0 : i32
    %c0_i32_0 = arith.constant 0 : i32
    %c0_i32_1 = arith.constant 0 : i32
    %c0_i32_2 = arith.constant 0 : i32
    return %c0_i32, %c0_i32_0, %c0_i32_1 : i32, i32, i32
  }
  func.func @transform_3(%arg0: i32) -> (i32, i32, i32) {
    %c0_i32 = arith.constant 0 : i32
    %c0_i32_0 = arith.constant 0 : i32
    %c0_i32_1 = arith.constant 0 : i32
    %c0_i32_2 = arith.constant 0 : i32
    return %c0_i32, %c0_i32_0, %c0_i32_1 : i32, i32, i32
  }
  func.func @transform_4(%arg0: i32) -> (i32, i32) {
    %c0_i32 = arith.constant 0 : i32
    %c0_i32_0 = arith.constant 0 : i32
    %c0_i32_1 = arith.constant 0 : i32
    return %c0_i32, %c0_i32_0 : i32, i32
  }
  func.func @transform_5(%arg0: i32) -> (i32, i32) {
    %c0_i32 = arith.constant 0 : i32
    %c0_i32_0 = arith.constant 0 : i32
    %c0_i32_1 = arith.constant 0 : i32
    return %c0_i32, %c0_i32_0 : i32, i32
  }
  func.func @transform_6(%arg0: i32) -> (i32, i32, i32) {
    %c0_i32 = arith.constant 0 : i32
    %c0_i32_0 = arith.constant 0 : i32
    %c0_i32_1 = arith.constant 0 : i32
    return %arg0, %c0_i32, %c0_i32_0 : i32, i32, i32
  }
  func.func @transform_7(%arg0: i32) -> (i32, i32, i32) {
    %c0_i32 = arith.constant 0 : i32
    %c0_i32_0 = arith.constant 0 : i32
    %c0_i32_1 = arith.constant 0 : i32
    return %arg0, %c0_i32, %c0_i32_0 : i32, i32, i32
  }
}

</mosaic_0001>

<llo_original>
// kernel: split_forward.1
$region0: #{split_forward.1}
  #allocation0 [shape = 'u32[]', space=smem, size = 0x4, offset = 0x4, fixed_abs, tag = 'smem constant byte address 0x4 - core index']
  #allocation1 [shape = 'u32[144,128]{1,0:T(1,128)}', space=vmem, size = 0x12000, scoped, tag = 'internal scratch']
  %s0 = inlined_call_operand.vmem [shape: f32[2,2,2,256], index: 0, kind: input, shape index: {}]
  %s1 = inlined_call_operand.vmem [shape: f32[9,256], index: 1, kind: input, shape index: {}]
  %s2 = inlined_call_operand.vmem [shape: bf16[9,2,2], index: 2, kind: input, shape index: {}]
  %s3 = inlined_call_operand.vmem [shape: bf16[9,2,2], index: 3, kind: input, shape index: {}]
  %s4 = inlined_call_operand.vmem [shape: f32[2,1], index: 4, kind: input, shape index: {}]
  %s5 = inlined_call_operand.vmem [shape: f32[2,1], index: 5, kind: input, shape index: {}]
  %s6 = inlined_call_operand.vmem [shape: f32[2,2,256], index: 6, kind: output, shape index: {0}]
  %s7 = inlined_call_operand.vmem [shape: f32[2,1,128], index: 7, kind: output, shape index: {1}]
  %8 = xla_tuple %s6, %s7
  %s9 = sld [smem:[#allocation0]]
  $region65: #{split_forward.1} parent=0
    _
  %s11 = ssub.s32 1, %s9
  %s12 = scalar_select 0, %s11, %s9
  loop: start=0, step=1, limit=4
  $region2: #{split_forward.1} parent=0 // loop_pre_header
    _
  $region3: #{split_forward.1} parent=0 // loop_header
    %s14 = sphi 0, %s18
    %p15 = scmp.ge.s32.totalorder %s14, 4
    %s24 = sphi 0, %s26
    %s27 = sphi 0, %s24
    %s28 = sphi 0, %s27
    %s44 = sphi 0, %s28
    %s48 = sphi 0, %s48
    %s50 = sphi 0, %s48
    %s51 = sphi 0, %s50
    %s65 = sphi 0, %s51
    %s69 = sphi 0, %s69
    %s71 = sphi 0, %s69
    %s72 = sphi 0, %s71
    %s86 = sphi 0, %s72
    %s90 = sphi 0, %s90
    %s92 = sphi 0, %s90
    %s93 = sphi 0, %s92
    %s107 = sphi 0, %s93
    %s111 = sphi 0, %s111
    %s113 = sphi 0, %s111
    %s114 = sphi 0, %s113
    %s128 = sphi 0, %s114
    %s132 = sphi 0, %s132
    %s134 = sphi 0, %s132
    %s135 = sphi 0, %s134
    %s149 = sphi 0, %s135
    %s155 = sphi 0, %s157
    %s158 = sphi 0, %s155
    %s159 = sphi 0, %s158
    %s175 = sphi 0, %s159
    %s181 = sphi 0, %s183
    %s184 = sphi 0, %s181
    %s185 = sphi 0, %s184
    %s201 = sphi 0, %s185
  $region4: #{split_forward.1} parent=0 // loop_header_branch
    %17 = sbr.rel (%p15) target = $region8
  $region5: #{split_forward.1} parent=0 // loop_body
    %s19 = ssub.s32 %s14, 1
    %s20 = ssub.s32 %s14, 2
    %s21 = sadd.s32 %s14, 1
    %s22 = ssub.s32 %s14, %s21
    %p23 = scmp.eq.s32.totalorder %s22, 0
    %s25 = sadd.s32 %s24, 1
    %s26 = scalar_select %p23, %s24, %s25
    %p29 = pneg %p23
    %p30 = scmp.eq.s32.totalorder %s14, 1
    %p31 = por %p29, %p30
    %p32 = scmp.ne.s32.totalorder %s24, %s27
    %p33 = scmp.eq.s32.totalorder %s14, 0
    %p34 = por %p32, %p33
    %p35 = scmp.ne.s32.totalorder %s24, %s27
    %p36 = scmp.eq.s32.totalorder %s19, 1
    %p37 = por %p35, %p36
    %p38 = scmp.ne.s32.totalorder %s27, %s28
    %p39 = scmp.eq.s32.totalorder %s19, 0
    %p40 = por %p38, %p39
    %p41 = scmp.ne.s32.totalorder %s27, %s28
    %p42 = scmp.eq.s32.totalorder %s20, 1
    %p43 = por %p41, %p42
    %p45 = scmp.ne.s32.totalorder %s28, %s44
    %p46 = scmp.eq.s32.totalorder %s20, 0
    %p47 = por %p45, %p46
    %s49 = sadd.s32 %s48, 1
    %p52 = scmp.eq.s32.totalorder %s14, 1
    %p53 = scmp.ne.s32.totalorder %s48, %s50
    %p54 = scmp.eq.s32.totalorder %s14, 0
    %p55 = por %p53, %p54
    %p56 = scmp.ne.s32.totalorder %s48, %s50
    %p57 = scmp.eq.s32.totalorder %s19, 1
    %p58 = por %p56, %p57
    %p59 = scmp.ne.s32.totalorder %s50, %s51
    %p60 = scmp.eq.s32.totalorder %s19, 0
    %p61 = por %p59, %p60
    %p62 = scmp.ne.s32.totalorder %s50, %s51
    %p63 = scmp.eq.s32.totalorder %s20, 1
    %p64 = por %p62, %p63
    %p66 = scmp.ne.s32.totalorder %s51, %s65
    %p67 = scmp.eq.s32.totalorder %s20, 0
    %p68 = por %p66, %p67
    %s70 = sadd.s32 %s69, 1
    %p73 = scmp.eq.s32.totalorder %s14, 1
    %p74 = scmp.ne.s32.totalorder %s69, %s71
    %p75 = scmp.eq.s32.totalorder %s14, 0
    %p76 = por %p74, %p75
    %p77 = scmp.ne.s32.totalorder %s69, %s71
    %p78 = scmp.eq.s32.totalorder %s19, 1
    %p79 = por %p77, %p78
    %p80 = scmp.ne.s32.totalorder %s71, %s72
    %p81 = scmp.eq.s32.totalorder %s19, 0
    %p82 = por %p80, %p81
    %p83 = scmp.ne.s32.totalorder %s71, %s72
    %p84 = scmp.eq.s32.totalorder %s20, 1
    %p85 = por %p83, %p84
    %p87 = scmp.ne.s32.totalorder %s72, %s86
    %p88 = scmp.eq.s32.totalorder %s20, 0
    %p89 = por %p87, %p88
    %s91 = sadd.s32 %s90, 1
    %p94 = scmp.eq.s32.totalorder %s14, 1
    %p95 = scmp.ne.s32.totalorder %s90, %s92
    %p96 = scmp.eq.s32.totalorder %s14, 0
    %p97 = por %p95, %p96
    %p98 = scmp.ne.s32.totalorder %s90, %s92
    %p99 = scmp.eq.s32.totalorder %s19, 1
    %p100 = por %p98, %p99
    %p101 = scmp.ne.s32.totalorder %s92, %s93
    %p102 = scmp.eq.s32.totalorder %s19, 0
    %p103 = por %p101, %p102
    %p104 = scmp.ne.s32.totalorder %s92, %s93
    %p105 = scmp.eq.s32.totalorder %s20, 1
    %p106 = por %p104, %p105
    %p108 = scmp.ne.s32.totalorder %s93, %s107
    %p109 = scmp.eq.s32.totalorder %s20, 0
    %p110 = por %p108, %p109
    %s112 = sadd.s32 %s111, 1
    %p115 = scmp.eq.s32.totalorder %s14, 1
    %p116 = scmp.ne.s32.totalorder %s111, %s113
    %p117 = scmp.eq.s32.totalorder %s14, 0
    %p118 = por %p116, %p117
    %p119 = scmp.ne.s32.totalorder %s111, %s113
    %p120 = scmp.eq.s32.totalorder %s19, 1
    %p121 = por %p119, %p120
    %p122 = scmp.ne.s32.totalorder %s113, %s114
    %p123 = scmp.eq.s32.totalorder %s19, 0
    %p124 = por %p122, %p123
    %p125 = scmp.ne.s32.totalorder %s113, %s114
    %p126 = scmp.eq.s32.totalorder %s20, 1
    %p127 = por %p125, %p126
    %p129 = scmp.ne.s32.totalorder %s114, %s128
    %p130 = scmp.eq.s32.totalorder %s20, 0
    %p131 = por %p129, %p130
    %s133 = sadd.s32 %s132, 1
    %p136 = scmp.eq.s32.totalorder %s14, 1
    %p137 = scmp.ne.s32.totalorder %s132, %s134
    %p138 = scmp.eq.s32.totalorder %s14, 0
    %p139 = por %p137, %p138
    %p140 = scmp.ne.s32.totalorder %s132, %s134
    %p141 = scmp.eq.s32.totalorder %s19, 1
    %p142 = por %p140, %p141
    %p143 = scmp.ne.s32.totalorder %s134, %s135
    %p144 = scmp.eq.s32.totalorder %s19, 0
    %p145 = por %p143, %p144
    %p146 = scmp.ne.s32.totalorder %s134, %s135
    %p147 = scmp.eq.s32.totalorder %s20, 1
    %p148 = por %p146, %p147
    %p150 = scmp.ne.s32.totalorder %s135, %s149
    %p151 = scmp.eq.s32.totalorder %s20, 0
    %p152 = por %p150, %p151
    %s153 = ssub.s32 %s14, %s21
    %p154 = scmp.eq.s32.totalorder %s153, 0
    %s156 = sadd.s32 %s155, 1
    %s157 = scalar_select %p154, %s155, %s156
    %p160 = pneg %p154
    %p161 = scmp.eq.s32.totalorder %s14, 1
    %p162 = por %p160, %p161
    %p163 = scmp.ne.s32.totalorder %s155, %s158
    %p164 = scmp.eq.s32.totalorder %s14, 0
    %p165 = por %p163, %p164
    %p166 = scmp.ne.s32.totalorder %s155, %s158
    %p167 = scmp.eq.s32.totalorder %s19, 1
    %p168 = por %p166, %p167
    %p169 = scmp.ne.s32.totalorder %s158, %s159
    %p170 = scmp.eq.s32.totalorder %s19, 0
    %p171 = por %p169, %p170
    %p172 = scmp.ne.s32.totalorder %s158, %s159
    %p173 = scmp.eq.s32.totalorder %s20, 1
    %p174 = por %p172, %p173
    %p176 = scmp.ne.s32.totalorder %s159, %s175
    %p177 = scmp.eq.s32.totalorder %s20, 0
    %p178 = por %p176, %p177
    %s179 = ssub.s32 %s14, %s21
    %p180 = scmp.eq.s32.totalorder %s179, 0
    %s182 = sadd.s32 %s181, 1
    %s183 = scalar_select %p180, %s181, %s182
    %p186 = pneg %p180
    %p187 = scmp.eq.s32.totalorder %s14, 1
    %p188 = por %p186, %p187
    %p189 = scmp.ne.s32.totalorder %s181, %s184
    %p190 = scmp.eq.s32.totalorder %s14, 0
    %p191 = por %p189, %p190
    %p192 = scmp.ne.s32.totalorder %s181, %s184
    %p193 = scmp.eq.s32.totalorder %s19, 1
    %p194 = por %p192, %p193
    %p195 = scmp.ne.s32.totalorder %s184, %s185
    %p196 = scmp.eq.s32.totalorder %s19, 0
    %p197 = por %p195, %p196
    %p198 = scmp.ne.s32.totalorder %s184, %s185
    %p199 = scmp.eq.s32.totalorder %s20, 1
    %p200 = por %p198, %p199
    %p202 = scmp.ne.s32.totalorder %s185, %s201
    %p203 = scmp.eq.s32.totalorder %s20, 0
    %p204 = por %p202, %p203
    %p205 = scmp.le.s32.totalorder 1, %s14
    %p206 = scmp.lt.s32.totalorder %s14, 3
    %p207 = pnand %p205, %p206
    %p208 = pneg %p207
    // Predicated region
    $region9: #{split_forward.1} parent=5 // pred_check
      _
    $region10: #{split_forward.1} parent=5 // pred_check_branch
      %210 = sbr.rel (%p207) target = $region12
    $region11: #{split_forward.1} parent=5 // pred_region
      %s211 = ssub.s32 %s14, 1
      // Predicated region
      $region13: #{split_forward.1} parent=11 // pred_check
        %p212 = pneg %p61
      $region14: #{split_forward.1} parent=11 // pred_check_branch
        %214 = sbr.rel (%p212) target = $region16
      $region15: #{split_forward.1} parent=11 // pred_region
        _
      $region16: #{split_forward.1} parent=11 // pred_fallthru
        _
      // Predicated region
      $region17: #{split_forward.1} parent=11 // pred_check
        %p215 = pneg %p82
      $region18: #{split_forward.1} parent=11 // pred_check_branch
        %217 = sbr.rel (%p215) target = $region20
      $region19: #{split_forward.1} parent=11 // pred_region
        _
      $region20: #{split_forward.1} parent=11 // pred_fallthru
        _
      // Predicated region
      $region21: #{split_forward.1} parent=11 // pred_check
        %p218 = pneg %p103
      $region22: #{split_forward.1} parent=11 // pred_check_branch
        %220 = sbr.rel (%p218) target = $region24
      $region23: #{split_forward.1} parent=11 // pred_region
        _
      $region24: #{split_forward.1} parent=11 // pred_fallthru
        _
      // Predicated region
      $region25: #{split_forward.1} parent=11 // pred_check
        %p221 = pneg %p124
      $region26: #{split_forward.1} parent=11 // pred_check_branch
        %223 = sbr.rel (%p221) target = $region28
      $region27: #{split_forward.1} parent=11 // pred_region
        _
      $region28: #{split_forward.1} parent=11 // pred_fallthru
        _
      // Predicated region
      $region29: #{split_forward.1} parent=11 // pred_check
        %p224 = pneg %p145
      $region30: #{split_forward.1} parent=11 // pred_check_branch
        %226 = sbr.rel (%p224) target = $region32
      $region31: #{split_forward.1} parent=11 // pred_region
        _
      $region32: #{split_forward.1} parent=11 // pred_fallthru
        _
    $region12: #{split_forward.1} parent=5 // pred_fallthru
      _
    %p227 = scmp.lt.s32.totalorder %s14, 2
    // Predicated region
    $region33: #{split_forward.1} parent=5 // pred_check
      %p228 = pneg %p227
    $region34: #{split_forward.1} parent=5 // pred_check_branch
      %230 = sbr.rel (%p228) target = $region36
    $region35: #{split_forward.1} parent=5 // pred_region
      // Predicated region
      $region37: #{split_forward.1} parent=35 // pred_check
        %p231 = pneg %p34
      $region38: #{split_forward.1} parent=35 // pred_check_branch
        %233 = sbr.rel (%p231) target = $region40
      $region39: #{split_forward.1} parent=35 // pred_region
        %p234 = scmp.lt.s32.totalorder %s14, 1
        %s235 = scalar_select %p234, %s14, 1
        %s236 = smul.addr %s235, 4
        %s237 = smul.addr %s236, 2
        %s238 = scalar_lea.vmem %s0, %s237
      $region40: #{split_forward.1} parent=35 // pred_fallthru
        _
    $region36: #{split_forward.1} parent=5 // pred_fallthru
      _
    %p239 = scmp.le.s32.totalorder 1, %s14
    %p240 = scmp.lt.s32.totalorder %s14, 3
    %p241 = pnand %p239, %p240
    %p242 = pneg %p241
    // Predicated region
    $region41: #{split_forward.1} parent=5 // pred_check
      _
    $region42: #{split_forward.1} parent=5 // pred_check_branch
      %244 = sbr.rel (%p241) target = $region44
    $region43: #{split_forward.1} parent=5 // pred_region
      %s245 = ssub.s32 %s14, 1
      %p246 = scmp.lt.s32.totalorder %s19, 1
      %s247 = scalar_select %p246, %s19, 1
      %s248 = smul.addr %s247, 4
      %s249 = smul.addr %s248, 2
      %s250 = scalar_lea.vmem %s0, %s249
      %p251 = pneg %p40
      %p252 = pneg %p37
      %p253 = pneg %p61
      %p254 = pneg %p58
      %p255 = pneg %p82
      %p256 = pneg %p79
      %p257 = pneg %p103
      %p258 = pneg %p100
      %p259 = pneg %p124
      %p260 = pneg %p121
      %p261 = pneg %p145
      %p262 = pneg %p142
      %p263 = pneg %p171
      %p264 = pneg %p168
      %p265 = scmp.lt.s32.totalorder %s19, 1
      %s266 = scalar_select %p265, %s19, 1
      %s267 = smul.addr %s266, 2
      %s268 = smul.addr %s267, 2
      %s269 = scalar_lea.vmem %s6, %s268
      %p270 = pneg %p197
      %p271 = pneg %p194
      %p272 = scmp.lt.s32.totalorder %s19, 1
      %s273 = scalar_select %p272, %s19, 1
      %s274 = scalar_lea.vmem %s7, %s273
      %p275 = scmp.lt.s32.totalorder %s19, 1
      %s276 = scalar_select %p275, %s19, 1
      %s277 = smul.addr %s276, 4
      %s278 = smul.addr %s277, 2
      %s279 = scalar_lea.vmem %s0, %s278
      %p280 = scmp.lt.s32.totalorder %s19, 1
      %s281 = scalar_select %p280, %s19, 1
      %s282 = smul.addr %s281, 2
      %s283 = smul.addr %s282, 2
      %s284 = scalar_lea.vmem %s6, %s283
      %p285 = scmp.lt.s32.totalorder %s19, 1
      %s286 = scalar_select %p285, %s19, 1
      %s287 = scalar_lea.vmem %s7, %s286
      %v289 = vld [vmem:[%s2] sm:$0x1]
      %s290 = scalar_lea.vmem %s2, 1
      %v291 = vld [vmem:[%s290] sm:$0x1]
      %s292 = scalar_lea.vmem %s2, 2
      %v293 = vld [vmem:[%s292] sm:$0x1]
      %s294 = scalar_lea.vmem %s2, 3
      %v295 = vld [vmem:[%s294] sm:$0x1]
      %s296 = scalar_lea.vmem %s2, 4
      %v297 = vld [vmem:[%s296] sm:$0x1]
      %s298 = scalar_lea.vmem %s2, 5
      %v299 = vld [vmem:[%s298] sm:$0x1]
      %s300 = scalar_lea.vmem %s2, 6
      %v301 = vld [vmem:[%s300] sm:$0x1]
      %s302 = scalar_lea.vmem %s2, 7
      %v303 = vld [vmem:[%s302] sm:$0x1]
      %s304 = scalar_lea.vmem %s2, 8
      %v305 = vld [vmem:[%s304] sm:$0x1]
      %v306 = vld [vmem:[%s3] sm:$0x1]
      %s307 = scalar_lea.vmem %s3, 1
      %v308 = vld [vmem:[%s307] sm:$0x1]
      %s309 = scalar_lea.vmem %s3, 2
      %v310 = vld [vmem:[%s309] sm:$0x1]
      %s311 = scalar_lea.vmem %s3, 3
      %v312 = vld [vmem:[%s311] sm:$0x1]
      %s313 = scalar_lea.vmem %s3, 4
      %v314 = vld [vmem:[%s313] sm:$0x1]
      %s315 = scalar_lea.vmem %s3, 5
      %v316 = vld [vmem:[%s315] sm:$0x1]
      %s317 = scalar_lea.vmem %s3, 6
      %v318 = vld [vmem:[%s317] sm:$0x1]
      %s319 = scalar_lea.vmem %s3, 7
      %v320 = vld [vmem:[%s319] sm:$0x1]
      %s321 = scalar_lea.vmem %s3, 8
      %v322 = vld [vmem:[%s321] sm:$0x1]
      %v323 = vld [vmem:[%s1] ss:$8 sm:$0x3]
      %v325 = vlaneseq
      %v326 = vshrl.u32 %v325, 7
      %v327 = vsub.s32 0, %v326
      %v328 = vrot.slane %v323, %v327
      %v329 = vlaneseq
      %v330 = vshrl.u32 %v329, 7
      %v331 = vsub.s32 1, %v330
      %v332 = vrot.slane %v323, %v331
      %s335 = scalar_lea.vmem %s1, 1
      %v336 = vld [vmem:[%s335] ss:$8 sm:$0x3]
      %v338 = vlaneseq
      %v339 = vshrl.u32 %v338, 7
      %v340 = vsub.s32 0, %v339
      %v341 = vrot.slane %v336, %v340
      %v342 = vlaneseq
      %v343 = vshrl.u32 %v342, 7
      %v344 = vsub.s32 1, %v343
      %v345 = vrot.slane %v336, %v344
      %s348 = scalar_lea.vmem %s1, 2
      %v349 = vld [vmem:[%s348] ss:$8 sm:$0x3]
      %v351 = vlaneseq
      %v352 = vshrl.u32 %v351, 7
      %v353 = vsub.s32 0, %v352
      %v354 = vrot.slane %v349, %v353
      %v355 = vlaneseq
      %v356 = vshrl.u32 %v355, 7
      %v357 = vsub.s32 1, %v356
      %v358 = vrot.slane %v349, %v357
      %s361 = scalar_lea.vmem %s1, 3
      %v362 = vld [vmem:[%s361] ss:$8 sm:$0x3]
      %v364 = vlaneseq
      %v365 = vshrl.u32 %v364, 7
      %v366 = vsub.s32 0, %v365
      %v367 = vrot.slane %v362, %v366
      %v368 = vlaneseq
      %v369 = vshrl.u32 %v368, 7
      %v370 = vsub.s32 1, %v369
      %v371 = vrot.slane %v362, %v370
      %s374 = scalar_lea.vmem %s1, 5
      %v375 = vld [vmem:[%s374] ss:$8 sm:$0x3]
      %v377 = vlaneseq
      %v378 = vshrl.u32 %v377, 7
      %v379 = vsub.s32 0, %v378
      %v380 = vrot.slane %v375, %v379
      %v381 = vlaneseq
      %v382 = vshrl.u32 %v381, 7
      %v383 = vsub.s32 1, %v382
      %v384 = vrot.slane %v375, %v383
      %s387 = scalar_lea.vmem %s1, 6
      %v388 = vld [vmem:[%s387] ss:$8 sm:$0x3]
      %v390 = vlaneseq
      %v391 = vshrl.u32 %v390, 7
      %v392 = vsub.s32 0, %v391
      %v393 = vrot.slane %v388, %v392
      %v394 = vlaneseq
      %v395 = vshrl.u32 %v394, 7
      %v396 = vsub.s32 1, %v395
      %v397 = vrot.slane %v388, %v396
      %s400 = scalar_lea.vmem %s1, 7
      %v401 = vld [vmem:[%s400] ss:$8 sm:$0x3]
      %v403 = vlaneseq
      %v404 = vshrl.u32 %v403, 7
      %v405 = vsub.s32 0, %v404
      %v406 = vrot.slane %v401, %v405
      %v407 = vlaneseq
      %v408 = vshrl.u32 %v407, 7
      %v409 = vsub.s32 1, %v408
      %v410 = vrot.slane %v401, %v409
      %s413 = scalar_lea.vmem %s1, 16
      %v414 = vld [vmem:[%s413] ss:$8 sm:$0x3]
      %v416 = vlaneseq
      %v417 = vshrl.u32 %v416, 7
      %v418 = vsub.s32 0, %v417
      %v419 = vrot.slane %v414, %v418
      %v420 = vlaneseq
      %v421 = vshrl.u32 %v420, 7
      %v422 = vsub.s32 1, %v421
      %v423 = vrot.slane %v414, %v422
      %v426 = vld [vmem:[%s4] sm:$0x3]
      %428 = vset.pattern.permute.xlu0 0
      %429 = vperm.xlu0 %428, %v426
      %v430 = vpop.permute.xlu0 %429
      %v432 = vld [vmem:[%s5] sm:$0x3]
      %434 = vset.pattern.permute.xlu0 0
      %435 = vperm.xlu0 %434, %v432
      %v436 = vpop.permute.xlu0 %435
      %v438 = vld [vmem:[%s279] sm:$0xf]
      %s439 = scalar_lea.vmem %s279, 4
      %v440 = vld [vmem:[%s439] sm:$0xf]
      %v443 = vunpack.c.l.s4 1983009808
      %v444 = vunpack.c.0.s8 %v443
      %v445 = vlaneseq
      %v446 = vshrl.u32 %v445, 7
      %v447 = vsub.s32 %v444, %v446
      %v448 = vrot.slane %v438, %v447
      %v449 = vcombine.high %v448, %v448
      %452 = vrot.lane.b32.xlu0 %v448, 17
      %v453 = vpop.permute.xlu0 %452
      %454 = vrot.lane.b32.xlu0 %v449, 17
      %v455 = vpop.permute.xlu0 %454
      %v456 = vlaneseq
      %v457 = vand.u32 %v456, 127
      %vm458 = vcmp.lt.s32.totalorder %v457, 17
      %v459 = vsel %vm458, %v453, %v455
      %v460 = vsel %vm458, %v455, %v453
      %v461 = vmul.f32 %v460, %v328
      %v462 = vmul.f32 %v459, %v332
      %v463 = vpack.c.bf16 %v461, %v461
      %v464 = vpack.c.bf16 %v462, %v462
      %vm465 = vcmask 15360
      %v467 = vsel %vm465, %v289, 0
      %vm469 = vcmask 1040384
      %v471 = vsel %vm469, %v463, 0
      %v474 = vsel %vm469, %v464, 0
      %476 = vmatprep.subr.bf16.mxu0 0
      %477 = vmatpush1.bf16.msra.mxu0 0
      %478 = vmatprep.subr.bf16.mxu0 0
      %479 = vmatpush1.bf16.msra.mxu0 0
      %480 = vmatprep.subr.bf16.mxu0 0
      %481 = vmatpush1.bf16.msra.mxu0 0
      %482 = vmatprep.subr.bf16.mxu0 0
      %483 = vmatpush1.bf16.msra.mxu0 0
      %484 = vmatprep.subr.bf16.mxu0 0
      %485 = vmatpush1.bf16.msra.mxu0 0
      %486 = vmatprep.subr.bf16.mxu0 0
      %487 = vmatpush1.bf16.msra.mxu0 0
      %488 = vmatprep.subr.bf16.mxu0 0
      %489 = vmatpush1.bf16.msra.mxu0 0
      %490 = vmatprep.subr.bf16.mxu0 %v474
      %491 = vmatpush1.bf16.msra.mxu0 %v471
      %492 = vmatprep.subr.bf16.mxu0 0
      %493 = vmatpush2.bf16.msra.mxu0 0
      %494 = vmatprep.subr.bf16.mxu0 0
      %495 = vmatpush2.bf16.msra.mxu0 0
      %496 = vmatprep.subr.bf16.mxu0 0
      %497 = vmatpush2.bf16.msra.mxu0 0
      %498 = vmatprep.subr.bf16.mxu0 0
      %499 = vmatpush2.bf16.msra.mxu0 0
      %500 = vmatprep.subr.bf16.mxu0 0
      %501 = vmatpush2.bf16.msra.mxu0 0
      %502 = vmatprep.subr.bf16.mxu0 0
      %503 = vmatpush2.bf16.msra.mxu0 0
      %504 = vmatprep.subr.bf16.mxu0 0
      %505 = vmatpush2.bf16.msra.mxu0 0
      %506 = vmatprep.subr.bf16.mxu0 0
      %507 = vmatpush2.bf16.msra.mxu0 0
      %508 = vmatprep.mubr.bf16.mxu0 0
      %509 = vmatmul.mubr.bf16.gmra.mxu0 %v467
      %v510 = vpop.f32.mrf.mxu0
      %v511 = vadd.f32 0.0, %v510
      %v512 = vpop.f32.mrf.mxu0
      %v513 = vadd.f32 0.0, %v512
      %v514 = vpop.f32.mrf.mxu0
      %v515 = vpop.f32.mrf.mxu0
      %516 = vdwg.mxu0
      %v517 = vadd.f32 %v430, %v511
      %v518 = vadd.f32 %v430, %v513
      %v520 = vsel %vm465, %v306, 0
      %522 = vmatprep.subr.bf16.mxu0 0
      %523 = vmatpush1.bf16.msra.mxu0 0
      %524 = vmatprep.subr.bf16.mxu0 0
      %525 = vmatpush1.bf16.msra.mxu0 0
      %526 = vmatprep.subr.bf16.mxu0 0
      %527 = vmatpush1.bf16.msra.mxu0 0
      %528 = vmatprep.subr.bf16.mxu0 0
      %529 = vmatpush1.bf16.msra.mxu0 0
      %530 = vmatprep.subr.bf16.mxu0 0
      %531 = vmatpush1.bf16.msra.mxu0 0
      %532 = vmatprep.subr.bf16.mxu0 0
      %533 = vmatpush1.bf16.msra.mxu0 0
      %534 = vmatprep.subr.bf16.mxu0 0
      %535 = vmatpush1.bf16.msra.mxu0 0
      %536 = vmatprep.subr.bf16.mxu0 %v474
      %537 = vmatpush1.bf16.msra.mxu0 %v471
      %538 = vmatprep.subr.bf16.mxu0 0
      %539 = vmatpush2.bf16.msra.mxu0 0
      %540 = vmatprep.subr.bf16.mxu0 0
      %541 = vmatpush2.bf16.msra.mxu0 0
      %542 = vmatprep.subr.bf16.mxu0 0
      %543 = vmatpush2.bf16.msra.mxu0 0
      %544 = vmatprep.subr.bf16.mxu0 0
      %545 = vmatpush2.bf16.msra.mxu0 0
      %546 = vmatprep.subr.bf16.mxu0 0
      %547 = vmatpush2.bf16.msra.mxu0 0
      %548 = vmatprep.subr.bf16.mxu0 0
      %549 = vmatpush2.bf16.msra.mxu0 0
      %550 = vmatprep.subr.bf16.mxu0 0
      %551 = vmatpush2.bf16.msra.mxu0 0
      %552 = vmatprep.subr.bf16.mxu0 0
      %553 = vmatpush2.bf16.msra.mxu0 0
      %554 = vmatprep.mubr.bf16.mxu0 0
      %555 = vmatmul.mubr.bf16.gmra.mxu0 %v520
      %v556 = vpop.f32.mrf.mxu0
      %v557 = vadd.f32 0.0, %v556
      %v558 = vpop.f32.mrf.mxu0
      %v559 = vadd.f32 0.0, %v558
      %v560 = vpop.f32.mrf.mxu0
      %v561 = vpop.f32.mrf.mxu0
      %562 = vdwg.mxu0
      %v563 = vadd.f32 %v436, %v557
      %v564 = vadd.f32 %v436, %v559
      %565 = vrot.lane.b32.xlu0 %v448, 16
      %v566 = vpop.permute.xlu0 %565
      %567 = vrot.lane.b32.xlu0 %v449, 16
      %v568 = vpop.permute.xlu0 %567
      %vm569 = vcmp.lt.s32.totalorder %v457, 16
      %v570 = vsel %vm569, %v566, %v568
      %v571 = vsel %vm569, %v568, %v566
      %v572 = vmul.f32 %v571, %v341
      %v573 = vmul.f32 %v570, %v345
      %v574 = vpack.c.bf16 %v572, %v572
      %v575 = vpack.c.bf16 %v573, %v573
      %v577 = vsel %vm465, %v291, 0
      %v580 = vsel %vm469, %v574, 0
      %v583 = vsel %vm469, %v575, 0
      %585 = vmatprep.subr.bf16.mxu0 0
      %586 = vmatpush1.bf16.msra.mxu0 0
      %587 = vmatprep.subr.bf16.mxu0 0
      %588 = vmatpush1.bf16.msra.mxu0 0
      %589 = vmatprep.subr.bf16.mxu0 0
      %590 = vmatpush1.bf16.msra.mxu0 0
      %591 = vmatprep.subr.bf16.mxu0 0
      %592 = vmatpush1.bf16.msra.mxu0 0
      %593 = vmatprep.subr.bf16.mxu0 0
      %594 = vmatpush1.bf16.msra.mxu0 0
      %595 = vmatprep.subr.bf16.mxu0 0
      %596 = vmatpush1.bf16.msra.mxu0 0
      %597 = vmatprep.subr.bf16.mxu0 0
      %598 = vmatpush1.bf16.msra.mxu0 0
      %599 = vmatprep.subr.bf16.mxu0 %v583
      %600 = vmatpush1.bf16.msra.mxu0 %v580
      %601 = vmatprep.subr.bf16.mxu0 0
      %602 = vmatpush2.bf16.msra.mxu0 0
      %603 = vmatprep.subr.bf16.mxu0 0
      %604 = vmatpush2.bf16.msra.mxu0 0
      %605 = vmatprep.subr.bf16.mxu0 0
      %606 = vmatpush2.bf16.msra.mxu0 0
      %607 = vmatprep.subr.bf16.mxu0 0
      %608 = vmatpush2.bf16.msra.mxu0 0
      %609 = vmatprep.subr.bf16.mxu0 0
      %610 = vmatpush2.bf16.msra.mxu0 0
      %611 = vmatprep.subr.bf16.mxu0 0
      %612 = vmatpush2.bf16.msra.mxu0 0
      %613 = vmatprep.subr.bf16.mxu0 0
      %614 = vmatpush2.bf16.msra.mxu0 0
      %615 = vmatprep.subr.bf16.mxu0 0
      %616 = vmatpush2.bf16.msra.mxu0 0
      %617 = vmatprep.mubr.bf16.mxu0 0
      %618 = vmatmul.mubr.bf16.gmra.mxu0 %v577
      %v619 = vpop.f32.mrf.mxu0
      %v620 = vadd.f32 0.0, %v619
      %v621 = vpop.f32.mrf.mxu0
      %v622 = vadd.f32 0.0, %v621
      %v623 = vpop.f32.mrf.mxu0
      %v624 = vpop.f32.mrf.mxu0
      %625 = vdwg.mxu0
      %v626 = vadd.f32 %v517, %v620
      %v627 = vadd.f32 %v518, %v622
      %v629 = vsel %vm465, %v308, 0
      %631 = vmatprep.subr.bf16.mxu0 0
      %632 = vmatpush1.bf16.msra.mxu0 0
      %633 = vmatprep.subr.bf16.mxu0 0
      %634 = vmatpush1.bf16.msra.mxu0 0
      %635 = vmatprep.subr.bf16.mxu0 0
      %636 = vmatpush1.bf16.msra.mxu0 0
      %637 = vmatprep.subr.bf16.mxu0 0
      %638 = vmatpush1.bf16.msra.mxu0 0
      %639 = vmatprep.subr.bf16.mxu0 0
      %640 = vmatpush1.bf16.msra.mxu0 0
      %641 = vmatprep.subr.bf16.mxu0 0
      %642 = vmatpush1.bf16.msra.mxu0 0
      %643 = vmatprep.subr.bf16.mxu0 0
      %644 = vmatpush1.bf16.msra.mxu0 0
      %645 = vmatprep.subr.bf16.mxu0 %v583
      %646 = vmatpush1.bf16.msra.mxu0 %v580
      %647 = vmatprep.subr.bf16.mxu0 0
      %648 = vmatpush2.bf16.msra.mxu0 0
      %649 = vmatprep.subr.bf16.mxu0 0
      %650 = vmatpush2.bf16.msra.mxu0 0
      %651 = vmatprep.subr.bf16.mxu0 0
      %652 = vmatpush2.bf16.msra.mxu0 0
      %653 = vmatprep.subr.bf16.mxu0 0
      %654 = vmatpush2.bf16.msra.mxu0 0
      %655 = vmatprep.subr.bf16.mxu0 0
      %656 = vmatpush2.bf16.msra.mxu0 0
      %657 = vmatprep.subr.bf16.mxu0 0
      %658 = vmatpush2.bf16.msra.mxu0 0
      %659 = vmatprep.subr.bf16.mxu0 0
      %660 = vmatpush2.bf16.msra.mxu0 0
      %661 = vmatprep.subr.bf16.mxu0 0
      %662 = vmatpush2.bf16.msra.mxu0 0
      %663 = vmatprep.mubr.bf16.mxu0 0
      %664 = vmatmul.mubr.bf16.gmra.mxu0 %v629
      %v665 = vpop.f32.mrf.mxu0
      %v666 = vadd.f32 0.0, %v665
      %v667 = vpop.f32.mrf.mxu0
      %v668 = vadd.f32 0.0, %v667
      %v669 = vpop.f32.mrf.mxu0
      %v670 = vpop.f32.mrf.mxu0
      %671 = vdwg.mxu0
      %v672 = vadd.f32 %v563, %v666
      %v673 = vadd.f32 %v564, %v668
      %674 = vrot.lane.b32.xlu0 %v448, 15
      %v675 = vpop.permute.xlu0 %674
      %676 = vrot.lane.b32.xlu0 %v449, 15
      %v677 = vpop.permute.xlu0 %676
      %vm678 = vcmp.lt.s32.totalorder %v457, 15
      %v679 = vsel %vm678, %v675, %v677
      %v680 = vsel %vm678, %v677, %v675
      %v681 = vmul.f32 %v680, %v354
      %v682 = vmul.f32 %v679, %v358
      %v683 = vpack.c.bf16 %v681, %v681
      %v684 = vpack.c.bf16 %v682, %v682
      %v686 = vsel %vm465, %v293, 0
      %v689 = vsel %vm469, %v683, 0
      %v692 = vsel %vm469, %v684, 0
      %694 = vmatprep.subr.bf16.mxu0 0
      %695 = vmatpush1.bf16.msra.mxu0 0
      %696 = vmatprep.subr.bf16.mxu0 0
      %697 = vmatpush1.bf16.msra.mxu0 0
      %698 = vmatprep.subr.bf16.mxu0 0
      %699 = vmatpush1.bf16.msra.mxu0 0
      %700 = vmatprep.subr.bf16.mxu0 0
      %701 = vmatpush1.bf16.msra.mxu0 0
      %702 = vmatprep.subr.bf16.mxu0 0
      %703 = vmatpush1.bf16.msra.mxu0 0
      %704 = vmatprep.subr.bf16.mxu0 0
      %705 = vmatpush1.bf16.msra.mxu0 0
      %706 = vmatprep.subr.bf16.mxu0 0
      %707 = vmatpush1.bf16.msra.mxu0 0
      %708 = vmatprep.subr.bf16.mxu0 %v692
      %709 = vmatpush1.bf16.msra.mxu0 %v689
      %710 = vmatprep.subr.bf16.mxu0 0
      %711 = vmatpush2.bf16.msra.mxu0 0
      %712 = vmatprep.subr.bf16.mxu0 0
      %713 = vmatpush2.bf16.msra.mxu0 0
      %714 = vmatprep.subr.bf16.mxu0 0
      %715 = vmatpush2.bf16.msra.mxu0 0
      %716 = vmatprep.subr.bf16.mxu0 0
      %717 = vmatpush2.bf16.msra.mxu0 0
      %718 = vmatprep.subr.bf16.mxu0 0
      %719 = vmatpush2.bf16.msra.mxu0 0
      %720 = vmatprep.subr.bf16.mxu0 0
      %721 = vmatpush2.bf16.msra.mxu0 0
      %722 = vmatprep.subr.bf16.mxu0 0
      %723 = vmatpush2.bf16.msra.mxu0 0
      %724 = vmatprep.subr.bf16.mxu0 0
      %725 = vmatpush2.bf16.msra.mxu0 0
      %726 = vmatprep.mubr.bf16.mxu0 0
      %727 = vmatmul.mubr.bf16.gmra.mxu0 %v686
      %v728 = vpop.f32.mrf.mxu0
      %v729 = vadd.f32 0.0, %v728
      %v730 = vpop.f32.mrf.mxu0
      %v731 = vadd.f32 0.0, %v730
      %v732 = vpop.f32.mrf.mxu0
      %v733 = vpop.f32.mrf.mxu0
      %734 = vdwg.mxu0
      %v735 = vadd.f32 %v626, %v729
      %v736 = vadd.f32 %v627, %v731
      %v738 = vsel %vm465, %v310, 0
      %740 = vmatprep.subr.bf16.mxu0 0
      %741 = vmatpush1.bf16.msra.mxu0 0
      %742 = vmatprep.subr.bf16.mxu0 0
      %743 = vmatpush1.bf16.msra.mxu0 0
      %744 = vmatprep.subr.bf16.mxu0 0
      %745 = vmatpush1.bf16.msra.mxu0 0
      %746 = vmatprep.subr.bf16.mxu0 0
      %747 = vmatpush1.bf16.msra.mxu0 0
      %748 = vmatprep.subr.bf16.mxu0 0
      %749 = vmatpush1.bf16.msra.mxu0 0
      %750 = vmatprep.subr.bf16.mxu0 0
      %751 = vmatpush1.bf16.msra.mxu0 0
      %752 = vmatprep.subr.bf16.mxu0 0
      %753 = vmatpush1.bf16.msra.mxu0 0
      %754 = vmatprep.subr.bf16.mxu0 %v692
      %755 = vmatpush1.bf16.msra.mxu0 %v689
      %756 = vmatprep.subr.bf16.mxu0 0
      %757 = vmatpush2.bf16.msra.mxu0 0
      %758 = vmatprep.subr.bf16.mxu0 0
      %759 = vmatpush2.bf16.msra.mxu0 0
      %760 = vmatprep.subr.bf16.mxu0 0
      %761 = vmatpush2.bf16.msra.mxu0 0
      %762 = vmatprep.subr.bf16.mxu0 0
      %763 = vmatpush2.bf16.msra.mxu0 0
      %764 = vmatprep.subr.bf16.mxu0 0
      %765 = vmatpush2.bf16.msra.mxu0 0
      %766 = vmatprep.subr.bf16.mxu0 0
      %767 = vmatpush2.bf16.msra.mxu0 0
      %768 = vmatprep.subr.bf16.mxu0 0
      %769 = vmatpush2.bf16.msra.mxu0 0
      %770 = vmatprep.subr.bf16.mxu0 0
      %771 = vmatpush2.bf16.msra.mxu0 0
      %772 = vmatprep.mubr.bf16.mxu0 0
      %773 = vmatmul.mubr.bf16.gmra.mxu0 %v738
      %v774 = vpop.f32.mrf.mxu0
      %v775 = vadd.f32 0.0, %v774
      %v776 = vpop.f32.mrf.mxu0
      %v777 = vadd.f32 0.0, %v776
      %v778 = vpop.f32.mrf.mxu0
      %v779 = vpop.f32.mrf.mxu0
      %780 = vdwg.mxu0
      %v781 = vadd.f32 %v672, %v775
      %v782 = vadd.f32 %v673, %v777
      %783 = vrot.lane.b32.xlu0 %v448, 1
      %v784 = vpop.permute.xlu0 %783
      %785 = vrot.lane.b32.xlu0 %v449, 1
      %v786 = vpop.permute.xlu0 %785
      %vm787 = vcmp.lt.s32.totalorder %v457, 1
      %v788 = vsel %vm787, %v784, %v786
      %v789 = vsel %vm787, %v786, %v784
      %v790 = vmul.f32 %v789, %v367
      %v791 = vmul.f32 %v788, %v371
      %v792 = vpack.c.bf16 %v790, %v790
      %v793 = vpack.c.bf16 %v791, %v791
      %v795 = vsel %vm465, %v295, 0
      %v798 = vsel %vm469, %v792, 0
      %v801 = vsel %vm469, %v793, 0
      %803 = vmatprep.subr.bf16.mxu0 0
      %804 = vmatpush1.bf16.msra.mxu0 0
      %805 = vmatprep.subr.bf16.mxu0 0
      %806 = vmatpush1.bf16.msra.mxu0 0
      %807 = vmatprep.subr.bf16.mxu0 0
      %808 = vmatpush1.bf16.msra.mxu0 0
      %809 = vmatprep.subr.bf16.mxu0 0
      %810 = vmatpush1.bf16.msra.mxu0 0
      %811 = vmatprep.subr.bf16.mxu0 0
      %812 = vmatpush1.bf16.msra.mxu0 0
      %813 = vmatprep.subr.bf16.mxu0 0
      %814 = vmatpush1.bf16.msra.mxu0 0
      %815 = vmatprep.subr.bf16.mxu0 0
      %816 = vmatpush1.bf16.msra.mxu0 0
      %817 = vmatprep.subr.bf16.mxu0 %v801
      %818 = vmatpush1.bf16.msra.mxu0 %v798
      %819 = vmatprep.subr.bf16.mxu0 0
      %820 = vmatpush2.bf16.msra.mxu0 0
      %821 = vmatprep.subr.bf16.mxu0 0
      %822 = vmatpush2.bf16.msra.mxu0 0
      %823 = vmatprep.subr.bf16.mxu0 0
      %824 = vmatpush2.bf16.msra.mxu0 0
      %825 = vmatprep.subr.bf16.mxu0 0
      %826 = vmatpush2.bf16.msra.mxu0 0
      %827 = vmatprep.subr.bf16.mxu0 0
      %828 = vmatpush2.bf16.msra.mxu0 0
      %829 = vmatprep.subr.bf16.mxu0 0
      %830 = vmatpush2.bf16.msra.mxu0 0
      %831 = vmatprep.subr.bf16.mxu0 0
      %832 = vmatpush2.bf16.msra.mxu0 0
      %833 = vmatprep.subr.bf16.mxu0 0
      %834 = vmatpush2.bf16.msra.mxu0 0
      %835 = vmatprep.mubr.bf16.mxu0 0
      %836 = vmatmul.mubr.bf16.gmra.mxu0 %v795
      %v837 = vpop.f32.mrf.mxu0
      %v838 = vadd.f32 0.0, %v837
      %v839 = vpop.f32.mrf.mxu0
      %v840 = vadd.f32 0.0, %v839
      %v841 = vpop.f32.mrf.mxu0
      %v842 = vpop.f32.mrf.mxu0
      %843 = vdwg.mxu0
      %v844 = vadd.f32 %v735, %v838
      %v845 = vadd.f32 %v736, %v840
      %v847 = vsel %vm465, %v312, 0
      %849 = vmatprep.subr.bf16.mxu0 0
      %850 = vmatpush1.bf16.msra.mxu0 0
      %851 = vmatprep.subr.bf16.mxu0 0
      %852 = vmatpush1.bf16.msra.mxu0 0
      %853 = vmatprep.subr.bf16.mxu0 0
      %854 = vmatpush1.bf16.msra.mxu0 0
      %855 = vmatprep.subr.bf16.mxu0 0
      %856 = vmatpush1.bf16.msra.mxu0 0
      %857 = vmatprep.subr.bf16.mxu0 0
      %858 = vmatpush1.bf16.msra.mxu0 0
      %859 = vmatprep.subr.bf16.mxu0 0
      %860 = vmatpush1.bf16.msra.mxu0 0
      %861 = vmatprep.subr.bf16.mxu0 0
      %862 = vmatpush1.bf16.msra.mxu0 0
      %863 = vmatprep.subr.bf16.mxu0 %v801
      %864 = vmatpush1.bf16.msra.mxu0 %v798
      %865 = vmatprep.subr.bf16.mxu0 0
      %866 = vmatpush2.bf16.msra.mxu0 0
      %867 = vmatprep.subr.bf16.mxu0 0
      %868 = vmatpush2.bf16.msra.mxu0 0
      %869 = vmatprep.subr.bf16.mxu0 0
      %870 = vmatpush2.bf16.msra.mxu0 0
      %871 = vmatprep.subr.bf16.mxu0 0
      %872 = vmatpush2.bf16.msra.mxu0 0
      %873 = vmatprep.subr.bf16.mxu0 0
      %874 = vmatpush2.bf16.msra.mxu0 0
      %875 = vmatprep.subr.bf16.mxu0 0
      %876 = vmatpush2.bf16.msra.mxu0 0
      %877 = vmatprep.subr.bf16.mxu0 0
      %878 = vmatpush2.bf16.msra.mxu0 0
      %879 = vmatprep.subr.bf16.mxu0 0
      %880 = vmatpush2.bf16.msra.mxu0 0
      %881 = vmatprep.mubr.bf16.mxu0 0
      %882 = vmatmul.mubr.bf16.gmra.mxu0 %v847
      %v883 = vpop.f32.mrf.mxu0
      %v884 = vadd.f32 0.0, %v883
      %v885 = vpop.f32.mrf.mxu0
      %v886 = vadd.f32 0.0, %v885
      %v887 = vpop.f32.mrf.mxu0
      %v888 = vpop.f32.mrf.mxu0
      %889 = vdwg.mxu0
      %v890 = vadd.f32 %v781, %v884
      %v891 = vadd.f32 %v782, %v886
      %v892 = vpack.c.bf16 %v448, %v448
      %v893 = vpack.c.bf16 %v449, %v449
      %v895 = vsel %vm465, %v297, 0
      %v898 = vsel %vm469, %v892, 0
      %v901 = vsel %vm469, %v893, 0
      %903 = vmatprep.subr.bf16.mxu0 0
      %904 = vmatpush1.bf16.msra.mxu0 0
      %905 = vmatprep.subr.bf16.mxu0 0
      %906 = vmatpush1.bf16.msra.mxu0 0
      %907 = vmatprep.subr.bf16.mxu0 0
      %908 = vmatpush1.bf16.msra.mxu0 0
      %909 = vmatprep.subr.bf16.mxu0 0
      %910 = vmatpush1.bf16.msra.mxu0 0
      %911 = vmatprep.subr.bf16.mxu0 0
      %912 = vmatpush1.bf16.msra.mxu0 0
      %913 = vmatprep.subr.bf16.mxu0 0
      %914 = vmatpush1.bf16.msra.mxu0 0
      %915 = vmatprep.subr.bf16.mxu0 0
      %916 = vmatpush1.bf16.msra.mxu0 0
      %917 = vmatprep.subr.bf16.mxu0 %v901
      %918 = vmatpush1.bf16.msra.mxu0 %v898
      %919 = vmatprep.subr.bf16.mxu0 0
      %920 = vmatpush2.bf16.msra.mxu0 0
      %921 = vmatprep.subr.bf16.mxu0 0
      %922 = vmatpush2.bf16.msra.mxu0 0
      %923 = vmatprep.subr.bf16.mxu0 0
      %924 = vmatpush2.bf16.msra.mxu0 0
      %925 = vmatprep.subr.bf16.mxu0 0
      %926 = vmatpush2.bf16.msra.mxu0 0
      %927 = vmatprep.subr.bf16.mxu0 0
      %928 = vmatpush2.bf16.msra.mxu0 0
      %929 = vmatprep.subr.bf16.mxu0 0
      %930 = vmatpush2.bf16.msra.mxu0 0
      %931 = vmatprep.subr.bf16.mxu0 0
      %932 = vmatpush2.bf16.msra.mxu0 0
      %933 = vmatprep.subr.bf16.mxu0 0
      %934 = vmatpush2.bf16.msra.mxu0 0
      %935 = vmatprep.mubr.bf16.mxu0 0
      %936 = vmatmul.mubr.bf16.gmra.mxu0 %v895
      %v937 = vpop.f32.mrf.mxu0
      %v938 = vadd.f32 0.0, %v937
      %v939 = vpop.f32.mrf.mxu0
      %v940 = vadd.f32 0.0, %v939
      %v941 = vpop.f32.mrf.mxu0
      %v942 = vpop.f32.mrf.mxu0
      %943 = vdwg.mxu0
      %v944 = vadd.f32 %v844, %v938
      %v945 = vadd.f32 %v845, %v940
      %v947 = vsel %vm465, %v314, 0
      %949 = vmatprep.subr.bf16.mxu0 0
      %950 = vmatpush1.bf16.msra.mxu0 0
      %951 = vmatprep.subr.bf16.mxu0 0
      %952 = vmatpush1.bf16.msra.mxu0 0
      %953 = vmatprep.subr.bf16.mxu0 0
      %954 = vmatpush1.bf16.msra.mxu0 0
      %955 = vmatprep.subr.bf16.mxu0 0
      %956 = vmatpush1.bf16.msra.mxu0 0
      %957 = vmatprep.subr.bf16.mxu0 0
      %958 = vmatpush1.bf16.msra.mxu0 0
      %959 = vmatprep.subr.bf16.mxu0 0
      %960 = vmatpush1.bf16.msra.mxu0 0
      %961 = vmatprep.subr.bf16.mxu0 0
      %962 = vmatpush1.bf16.msra.mxu0 0
      %963 = vmatprep.subr.bf16.mxu0 %v901
      %964 = vmatpush1.bf16.msra.mxu0 %v898
      %965 = vmatprep.subr.bf16.mxu0 0
      %966 = vmatpush2.bf16.msra.mxu0 0
      %967 = vmatprep.subr.bf16.mxu0 0
      %968 = vmatpush2.bf16.msra.mxu0 0
      %969 = vmatprep.subr.bf16.mxu0 0
      %970 = vmatpush2.bf16.msra.mxu0 0
      %971 = vmatprep.subr.bf16.mxu0 0
      %972 = vmatpush2.bf16.msra.mxu0 0
      %973 = vmatprep.subr.bf16.mxu0 0
      %974 = vmatpush2.bf16.msra.mxu0 0
      %975 = vmatprep.subr.bf16.mxu0 0
      %976 = vmatpush2.bf16.msra.mxu0 0
      %977 = vmatprep.subr.bf16.mxu0 0
      %978 = vmatpush2.bf16.msra.mxu0 0
      %979 = vmatprep.subr.bf16.mxu0 0
      %980 = vmatpush2.bf16.msra.mxu0 0
      %981 = vmatprep.mubr.bf16.mxu0 0
      %982 = vmatmul.mubr.bf16.gmra.mxu0 %v947
      %v983 = vpop.f32.mrf.mxu0
      %v984 = vadd.f32 0.0, %v983
      %v985 = vpop.f32.mrf.mxu0
      %v986 = vadd.f32 0.0, %v985
      %v987 = vpop.f32.mrf.mxu0
      %v988 = vpop.f32.mrf.mxu0
      %989 = vdwg.mxu0
      %v990 = vadd.f32 %v890, %v984
      %v991 = vadd.f32 %v891, %v986
      %992 = vrot.lane.b32.xlu0 %v448, 127
      %v993 = vpop.permute.xlu0 %992
      %994 = vrot.lane.b32.xlu0 %v449, 127
      %v995 = vpop.permute.xlu0 %994
      %vm996 = vcmp.lt.s32.totalorder %v457, 127
      %v997 = vsel %vm996, %v993, %v995
      %v998 = vsel %vm996, %v995, %v993
      %v999 = vmul.f32 %v997, %v380
      %v1000 = vmul.f32 %v998, %v384
      %v1001 = vpack.c.bf16 %v999, %v999
      %v1002 = vpack.c.bf16 %v1000, %v1000
      %v1004 = vsel %vm465, %v299, 0
      %v1007 = vsel %vm469, %v1001, 0
      %v1010 = vsel %vm469, %v1002, 0
      %1012 = vmatprep.subr.bf16.mxu0 0
      %1013 = vmatpush1.bf16.msra.mxu0 0
      %1014 = vmatprep.subr.bf16.mxu0 0
      %1015 = vmatpush1.bf16.msra.mxu0 0
      %1016 = vmatprep.subr.bf16.mxu0 0
      %1017 = vmatpush1.bf16.msra.mxu0 0
      %1018 = vmatprep.subr.bf16.mxu0 0
      %1019 = vmatpush1.bf16.msra.mxu0 0
      %1020 = vmatprep.subr.bf16.mxu0 0
      %1021 = vmatpush1.bf16.msra.mxu0 0
      %1022 = vmatprep.subr.bf16.mxu0 0
      %1023 = vmatpush1.bf16.msra.mxu0 0
      %1024 = vmatprep.subr.bf16.mxu0 0
      %1025 = vmatpush1.bf16.msra.mxu0 0
      %1026 = vmatprep.subr.bf16.mxu0 %v1010
      %1027 = vmatpush1.bf16.msra.mxu0 %v1007
      %1028 = vmatprep.subr.bf16.mxu0 0
      %1029 = vmatpush2.bf16.msra.mxu0 0
      %1030 = vmatprep.subr.bf16.mxu0 0
      %1031 = vmatpush2.bf16.msra.mxu0 0
      %1032 = vmatprep.subr.bf16.mxu0 0
      %1033 = vmatpush2.bf16.msra.mxu0 0
      %1034 = vmatprep.subr.bf16.mxu0 0
      %1035 = vmatpush2.bf16.msra.mxu0 0
      %1036 = vmatprep.subr.bf16.mxu0 0
      %1037 = vmatpush2.bf16.msra.mxu0 0
      %1038 = vmatprep.subr.bf16.mxu0 0
      %1039 = vmatpush2.bf16.msra.mxu0 0
      %1040 = vmatprep.subr.bf16.mxu0 0
      %1041 = vmatpush2.bf16.msra.mxu0 0
      %1042 = vmatprep.subr.bf16.mxu0 0
      %1043 = vmatpush2.bf16.msra.mxu0 0
      %1044 = vmatprep.mubr.bf16.mxu0 0
      %1045 = vmatmul.mubr.bf16.gmra.mxu0 %v1004
      %v1046 = vpop.f32.mrf.mxu0
      %v1047 = vadd.f32 0.0, %v1046
      %v1048 = vpop.f32.mrf.mxu0
      %v1049 = vadd.f32 0.0, %v1048
      %v1050 = vpop.f32.mrf.mxu0
      %v1051 = vpop.f32.mrf.mxu0
      %1052 = vdwg.mxu0
      %v1053 = vadd.f32 %v944, %v1047
      %v1054 = vadd.f32 %v945, %v1049
      %v1056 = vsel %vm465, %v316, 0
      %1058 = vmatprep.subr.bf16.mxu0 0
      %1059 = vmatpush1.bf16.msra.mxu0 0
      %1060 = vmatprep.subr.bf16.mxu0 0
      %1061 = vmatpush1.bf16.msra.mxu0 0
      %1062 = vmatprep.subr.bf16.mxu0 0
      %1063 = vmatpush1.bf16.msra.mxu0 0
      %1064 = vmatprep.subr.bf16.mxu0 0
      %1065 = vmatpush1.bf16.msra.mxu0 0
      %1066 = vmatprep.subr.bf16.mxu0 0
      %1067 = vmatpush1.bf16.msra.mxu0 0
      %1068 = vmatprep.subr.bf16.mxu0 0
      %1069 = vmatpush1.bf16.msra.mxu0 0
      %1070 = vmatprep.subr.bf16.mxu0 0
      %1071 = vmatpush1.bf16.msra.mxu0 0
      %1072 = vmatprep.subr.bf16.mxu0 %v1010
      %1073 = vmatpush1.bf16.msra.mxu0 %v1007
      %1074 = vmatprep.subr.bf16.mxu0 0
      %1075 = vmatpush2.bf16.msra.mxu0 0
      %1076 = vmatprep.subr.bf16.mxu0 0
      %1077 = vmatpush2.bf16.msra.mxu0 0
      %1078 = vmatprep.subr.bf16.mxu0 0
      %1079 = vmatpush2.bf16.msra.mxu0 0
      %1080 = vmatprep.subr.bf16.mxu0 0
      %1081 = vmatpush2.bf16.msra.mxu0 0
      %1082 = vmatprep.subr.bf16.mxu0 0
      %1083 = vmatpush2.bf16.msra.mxu0 0
      %1084 = vmatprep.subr.bf16.mxu0 0
      %1085 = vmatpush2.bf16.msra.mxu0 0
      %1086 = vmatprep.subr.bf16.mxu0 0
      %1087 = vmatpush2.bf16.msra.mxu0 0
      %1088 = vmatprep.subr.bf16.mxu0 0
      %1089 = vmatpush2.bf16.msra.mxu0 0
      %1090 = vmatprep.mubr.bf16.mxu0 0
      %1091 = vmatmul.mubr.bf16.gmra.mxu0 %v1056
      %v1092 = vpop.f32.mrf.mxu0
      %v1093 = vadd.f32 0.0, %v1092
      %v1094 = vpop.f32.mrf.mxu0
      %v1095 = vadd.f32 0.0, %v1094
      %v1096 = vpop.f32.mrf.mxu0
      %v1097 = vpop.f32.mrf.mxu0
      %1098 = vdwg.mxu0
      %v1099 = vadd.f32 %v990, %v1093
      %v1100 = vadd.f32 %v991, %v1095
      %1101 = vrot.lane.b32.xlu0 %v448, 113
      %v1102 = vpop.permute.xlu0 %1101
      %1103 = vrot.lane.b32.xlu0 %v449, 113
      %v1104 = vpop.permute.xlu0 %1103
      %vm1105 = vcmp.lt.s32.totalorder %v457, 113
      %v1106 = vsel %vm1105, %v1102, %v1104
      %v1107 = vsel %vm1105, %v1104, %v1102
      %v1108 = vmul.f32 %v1106, %v393
      %v1109 = vmul.f32 %v1107, %v397
      %v1110 = vpack.c.bf16 %v1108, %v1108
      %v1111 = vpack.c.bf16 %v1109, %v1109
      %v1113 = vsel %vm465, %v301, 0
      %v1116 = vsel %vm469, %v1110, 0
      %v1119 = vsel %vm469, %v1111, 0
      %1121 = vmatprep.subr.bf16.mxu0 0
      %1122 = vmatpush1.bf16.msra.mxu0 0
      %1123 = vmatprep.subr.bf16.mxu0 0
      %1124 = vmatpush1.bf16.msra.mxu0 0
      %1125 = vmatprep.subr.bf16.mxu0 0
      %1126 = vmatpush1.bf16.msra.mxu0 0
      %1127 = vmatprep.subr.bf16.mxu0 0
      %1128 = vmatpush1.bf16.msra.mxu0 0
      %1129 = vmatprep.subr.bf16.mxu0 0
      %1130 = vmatpush1.bf16.msra.mxu0 0
      %1131 = vmatprep.subr.bf16.mxu0 0
      %1132 = vmatpush1.bf16.msra.mxu0 0
      %1133 = vmatprep.subr.bf16.mxu0 0
      %1134 = vmatpush1.bf16.msra.mxu0 0
      %1135 = vmatprep.subr.bf16.mxu0 %v1119
      %1136 = vmatpush1.bf16.msra.mxu0 %v1116
      %1137 = vmatprep.subr.bf16.mxu0 0
      %1138 = vmatpush2.bf16.msra.mxu0 0
      %1139 = vmatprep.subr.bf16.mxu0 0
      %1140 = vmatpush2.bf16.msra.mxu0 0
      %1141 = vmatprep.subr.bf16.mxu0 0
      %1142 = vmatpush2.bf16.msra.mxu0 0
      %1143 = vmatprep.subr.bf16.mxu0 0
      %1144 = vmatpush2.bf16.msra.mxu0 0
      %1145 = vmatprep.subr.bf16.mxu0 0
      %1146 = vmatpush2.bf16.msra.mxu0 0
      %1147 = vmatprep.subr.bf16.mxu0 0
      %1148 = vmatpush2.bf16.msra.mxu0 0
      %1149 = vmatprep.subr.bf16.mxu0 0
      %1150 = vmatpush2.bf16.msra.mxu0 0
      %1151 = vmatprep.subr.bf16.mxu0 0
      %1152 = vmatpush2.bf16.msra.mxu0 0
      %1153 = vmatprep.mubr.bf16.mxu0 0
      %1154 = vmatmul.mubr.bf16.gmra.mxu0 %v1113
      %v1155 = vpop.f32.mrf.mxu0
      %v1156 = vadd.f32 0.0, %v1155
      %v1157 = vpop.f32.mrf.mxu0
      %v1158 = vadd.f32 0.0, %v1157
      %v1159 = vpop.f32.mrf.mxu0
      %v1160 = vpop.f32.mrf.mxu0
      %1161 = vdwg.mxu0
      %v1162 = vadd.f32 %v1053, %v1156
      %v1163 = vadd.f32 %v1054, %v1158
      %v1165 = vsel %vm465, %v318, 0
      %1167 = vmatprep.subr.bf16.mxu0 0
      %1168 = vmatpush1.bf16.msra.mxu0 0
      %1169 = vmatprep.subr.bf16.mxu0 0
      %1170 = vmatpush1.bf16.msra.mxu0 0
      %1171 = vmatprep.subr.bf16.mxu0 0
      %1172 = vmatpush1.bf16.msra.mxu0 0
      %1173 = vmatprep.subr.bf16.mxu0 0
      %1174 = vmatpush1.bf16.msra.mxu0 0
      %1175 = vmatprep.subr.bf16.mxu0 0
      %1176 = vmatpush1.bf16.msra.mxu0 0
      %1177 = vmatprep.subr.bf16.mxu0 0
      %1178 = vmatpush1.bf16.msra.mxu0 0
      %1179 = vmatprep.subr.bf16.mxu0 0
      %1180 = vmatpush1.bf16.msra.mxu0 0
      %1181 = vmatprep.subr.bf16.mxu0 %v1119
      %1182 = vmatpush1.bf16.msra.mxu0 %v1116
      %1183 = vmatprep.subr.bf16.mxu0 0
      %1184 = vmatpush2.bf16.msra.mxu0 0
      %1185 = vmatprep.subr.bf16.mxu0 0
      %1186 = vmatpush2.bf16.msra.mxu0 0
      %1187 = vmatprep.subr.bf16.mxu0 0
      %1188 = vmatpush2.bf16.msra.mxu0 0
      %1189 = vmatprep.subr.bf16.mxu0 0
      %1190 = vmatpush2.bf16.msra.mxu0 0
      %1191 = vmatprep.subr.bf16.mxu0 0
      %1192 = vmatpush2.bf16.msra.mxu0 0
      %1193 = vmatprep.subr.bf16.mxu0 0
      %1194 = vmatpush2.bf16.msra.mxu0 0
      %1195 = vmatprep.subr.bf16.mxu0 0
      %1196 = vmatpush2.bf16.msra.mxu0 0
      %1197 = vmatprep.subr.bf16.mxu0 0
      %1198 = vmatpush2.bf16.msra.mxu0 0
      %1199 = vmatprep.mubr.bf16.mxu0 0
      %1200 = vmatmul.mubr.bf16.gmra.mxu0 %v1165
      %v1201 = vpop.f32.mrf.mxu0
      %v1202 = vadd.f32 0.0, %v1201
      %v1203 = vpop.f32.mrf.mxu0
      %v1204 = vadd.f32 0.0, %v1203
      %v1205 = vpop.f32.mrf.mxu0
      %v1206 = vpop.f32.mrf.mxu0
      %1207 = vdwg.mxu0
      %v1208 = vadd.f32 %v1099, %v1202
      %v1209 = vadd.f32 %v1100, %v1204
      %1210 = vrot.lane.b32.xlu0 %v448, 112
      %v1211 = vpop.permute.xlu0 %1210
      %1212 = vrot.lane.b32.xlu0 %v449, 112
      %v1213 = vpop.permute.xlu0 %1212
      %vm1214 = vcmp.lt.s32.totalorder %v457, 112
      %v1215 = vsel %vm1214, %v1211, %v1213
      %v1216 = vsel %vm1214, %v1213, %v1211
      %v1217 = vmul.f32 %v1215, %v406
      %v1218 = vmul.f32 %v1216, %v410
      %v1219 = vpack.c.bf16 %v1217, %v1217
      %v1220 = vpack.c.bf16 %v1218, %v1218
      %v1222 = vsel %vm465, %v303, 0
      %v1225 = vsel %vm469, %v1219, 0
      %v1228 = vsel %vm469, %v1220, 0
      %1230 = vmatprep.subr.bf16.mxu0 0
      %1231 = vmatpush1.bf16.msra.mxu0 0
      %1232 = vmatprep.subr.bf16.mxu0 0
      %1233 = vmatpush1.bf16.msra.mxu0 0
      %1234 = vmatprep.subr.bf16.mxu0 0
      %1235 = vmatpush1.bf16.msra.mxu0 0
      %1236 = vmatprep.subr.bf16.mxu0 0
      %1237 = vmatpush1.bf16.msra.mxu0 0
      %1238 = vmatprep.subr.bf16.mxu0 0
      %1239 = vmatpush1.bf16.msra.mxu0 0
      %1240 = vmatprep.subr.bf16.mxu0 0
      %1241 = vmatpush1.bf16.msra.mxu0 0
      %1242 = vmatprep.subr.bf16.mxu0 0
      %1243 = vmatpush1.bf16.msra.mxu0 0
      %1244 = vmatprep.subr.bf16.mxu0 %v1228
      %1245 = vmatpush1.bf16.msra.mxu0 %v1225
      %1246 = vmatprep.subr.bf16.mxu0 0
      %1247 = vmatpush2.bf16.msra.mxu0 0
      %1248 = vmatprep.subr.bf16.mxu0 0
      %1249 = vmatpush2.bf16.msra.mxu0 0
      %1250 = vmatprep.subr.bf16.mxu0 0
      %1251 = vmatpush2.bf16.msra.mxu0 0
      %1252 = vmatprep.subr.bf16.mxu0 0
      %1253 = vmatpush2.bf16.msra.mxu0 0
      %1254 = vmatprep.subr.bf16.mxu0 0
      %1255 = vmatpush2.bf16.msra.mxu0 0
      %1256 = vmatprep.subr.bf16.mxu0 0
      %1257 = vmatpush2.bf16.msra.mxu0 0
      %1258 = vmatprep.subr.bf16.mxu0 0
      %1259 = vmatpush2.bf16.msra.mxu0 0
      %1260 = vmatprep.subr.bf16.mxu0 0
      %1261 = vmatpush2.bf16.msra.mxu0 0
      %1262 = vmatprep.mubr.bf16.mxu0 0
      %1263 = vmatmul.mubr.bf16.gmra.mxu0 %v1222
      %v1264 = vpop.f32.mrf.mxu0
      %v1265 = vadd.f32 0.0, %v1264
      %v1266 = vpop.f32.mrf.mxu0
      %v1267 = vadd.f32 0.0, %v1266
      %v1268 = vpop.f32.mrf.mxu0
      %v1269 = vpop.f32.mrf.mxu0
      %1270 = vdwg.mxu0
      %v1271 = vadd.f32 %v1162, %v1265
      %v1272 = vadd.f32 %v1163, %v1267
      %v1274 = vsel %vm465, %v320, 0
      %1276 = vmatprep.subr.bf16.mxu0 0
      %1277 = vmatpush1.bf16.msra.mxu0 0
      %1278 = vmatprep.subr.bf16.mxu0 0
      %1279 = vmatpush1.bf16.msra.mxu0 0
      %1280 = vmatprep.subr.bf16.mxu0 0
      %1281 = vmatpush1.bf16.msra.mxu0 0
      %1282 = vmatprep.subr.bf16.mxu0 0
      %1283 = vmatpush1.bf16.msra.mxu0 0
      %1284 = vmatprep.subr.bf16.mxu0 0
      %1285 = vmatpush1.bf16.msra.mxu0 0
      %1286 = vmatprep.subr.bf16.mxu0 0
      %1287 = vmatpush1.bf16.msra.mxu0 0
      %1288 = vmatprep.subr.bf16.mxu0 0
      %1289 = vmatpush1.bf16.msra.mxu0 0
      %1290 = vmatprep.subr.bf16.mxu0 %v1228
      %1291 = vmatpush1.bf16.msra.mxu0 %v1225
      %1292 = vmatprep.subr.bf16.mxu0 0
      %1293 = vmatpush2.bf16.msra.mxu0 0
      %1294 = vmatprep.subr.bf16.mxu0 0
      %1295 = vmatpush2.bf16.msra.mxu0 0
      %1296 = vmatprep.subr.bf16.mxu0 0
      %1297 = vmatpush2.bf16.msra.mxu0 0
      %1298 = vmatprep.subr.bf16.mxu0 0
      %1299 = vmatpush2.bf16.msra.mxu0 0
      %1300 = vmatprep.subr.bf16.mxu0 0
      %1301 = vmatpush2.bf16.msra.mxu0 0
      %1302 = vmatprep.subr.bf16.mxu0 0
      %1303 = vmatpush2.bf16.msra.mxu0 0
      %1304 = vmatprep.subr.bf16.mxu0 0
      %1305 = vmatpush2.bf16.msra.mxu0 0
      %1306 = vmatprep.subr.bf16.mxu0 0
      %1307 = vmatpush2.bf16.msra.mxu0 0
      %1308 = vmatprep.mubr.bf16.mxu0 0
      %1309 = vmatmul.mubr.bf16.gmra.mxu0 %v1274
      %v1310 = vpop.f32.mrf.mxu0
      %v1311 = vadd.f32 0.0, %v1310
      %v1312 = vpop.f32.mrf.mxu0
      %v1313 = vadd.f32 0.0, %v1312
      %v1314 = vpop.f32.mrf.mxu0
      %v1315 = vpop.f32.mrf.mxu0
      %1316 = vdwg.mxu0
      %v1317 = vadd.f32 %v1208, %v1311
      %v1318 = vadd.f32 %v1209, %v1313
      %1319 = vrot.lane.b32.xlu0 %v448, 111
      %v1320 = vpop.permute.xlu0 %1319
      %1321 = vrot.lane.b32.xlu0 %v449, 111
      %v1322 = vpop.permute.xlu0 %1321
      %vm1323 = vcmp.lt.s32.totalorder %v457, 111
      %v1324 = vsel %vm1323, %v1320, %v1322
      %v1325 = vsel %vm1323, %v1322, %v1320
      %v1326 = vmul.f32 %v1324, %v419
      %v1327 = vmul.f32 %v1325, %v423
      %v1328 = vpack.c.bf16 %v1326, %v1326
      %v1329 = vpack.c.bf16 %v1327, %v1327
      %v1331 = vsel %vm465, %v305, 0
      %v1334 = vsel %vm469, %v1328, 0
      %v1337 = vsel %vm469, %v1329, 0
      %1339 = vmatprep.subr.bf16.mxu0 0
      %1340 = vmatpush1.bf16.msra.mxu0 0
      %1341 = vmatprep.subr.bf16.mxu0 0
      %1342 = vmatpush1.bf16.msra.mxu0 0
      %1343 = vmatprep.subr.bf16.mxu0 0
      %1344 = vmatpush1.bf16.msra.mxu0 0
      %1345 = vmatprep.subr.bf16.mxu0 0
      %1346 = vmatpush1.bf16.msra.mxu0 0
      %1347 = vmatprep.subr.bf16.mxu0 0
      %1348 = vmatpush1.bf16.msra.mxu0 0
      %1349 = vmatprep.subr.bf16.mxu0 0
      %1350 = vmatpush1.bf16.msra.mxu0 0
      %1351 = vmatprep.subr.bf16.mxu0 0
      %1352 = vmatpush1.bf16.msra.mxu0 0
      %1353 = vmatprep.subr.bf16.mxu0 %v1337
      %1354 = vmatpush1.bf16.msra.mxu0 %v1334
      %1355 = vmatprep.subr.bf16.mxu0 0
      %1356 = vmatpush2.bf16.msra.mxu0 0
      %1357 = vmatprep.subr.bf16.mxu0 0
      %1358 = vmatpush2.bf16.msra.mxu0 0
      %1359 = vmatprep.subr.bf16.mxu0 0
      %1360 = vmatpush2.bf16.msra.mxu0 0
      %1361 = vmatprep.subr.bf16.mxu0 0
      %1362 = vmatpush2.bf16.msra.mxu0 0
      %1363 = vmatprep.subr.bf16.mxu0 0
      %1364 = vmatpush2.bf16.msra.mxu0 0
      %1365 = vmatprep.subr.bf16.mxu0 0
      %1366 = vmatpush2.bf16.msra.mxu0 0
      %1367 = vmatprep.subr.bf16.mxu0 0
      %1368 = vmatpush2.bf16.msra.mxu0 0
      %1369 = vmatprep.subr.bf16.mxu0 0
      %1370 = vmatpush2.bf16.msra.mxu0 0
      %1371 = vmatprep.mubr.bf16.mxu0 0
      %1372 = vmatmul.mubr.bf16.gmra.mxu0 %v1331
      %v1373 = vpop.f32.mrf.mxu0
      %v1374 = vadd.f32 0.0, %v1373
      %v1375 = vpop.f32.mrf.mxu0
      %v1376 = vadd.f32 0.0, %v1375
      %v1377 = vpop.f32.mrf.mxu0
      %v1378 = vpop.f32.mrf.mxu0
      %1379 = vdwg.mxu0
      %v1380 = vadd.f32 %v1271, %v1374
      %v1381 = vadd.f32 %v1272, %v1376
      %v1383 = vsel %vm465, %v322, 0
      %1385 = vmatprep.subr.bf16.mxu0 0
      %1386 = vmatpush1.bf16.msra.mxu0 0
      %1387 = vmatprep.subr.bf16.mxu0 0
      %1388 = vmatpush1.bf16.msra.mxu0 0
      %1389 = vmatprep.subr.bf16.mxu0 0
      %1390 = vmatpush1.bf16.msra.mxu0 0
      %1391 = vmatprep.subr.bf16.mxu0 0
      %1392 = vmatpush1.bf16.msra.mxu0 0
      %1393 = vmatprep.subr.bf16.mxu0 0
      %1394 = vmatpush1.bf16.msra.mxu0 0
      %1395 = vmatprep.subr.bf16.mxu0 0
      %1396 = vmatpush1.bf16.msra.mxu0 0
      %1397 = vmatprep.subr.bf16.mxu0 0
      %1398 = vmatpush1.bf16.msra.mxu0 0
      %1399 = vmatprep.subr.bf16.mxu0 %v1337
      %1400 = vmatpush1.bf16.msra.mxu0 %v1334
      %1401 = vmatprep.subr.bf16.mxu0 0
      %1402 = vmatpush2.bf16.msra.mxu0 0
      %1403 = vmatprep.subr.bf16.mxu0 0
      %1404 = vmatpush2.bf16.msra.mxu0 0
      %1405 = vmatprep.subr.bf16.mxu0 0
      %1406 = vmatpush2.bf16.msra.mxu0 0
      %1407 = vmatprep.subr.bf16.mxu0 0
      %1408 = vmatpush2.bf16.msra.mxu0 0
      %1409 = vmatprep.subr.bf16.mxu0 0
      %1410 = vmatpush2.bf16.msra.mxu0 0
      %1411 = vmatprep.subr.bf16.mxu0 0
      %1412 = vmatpush2.bf16.msra.mxu0 0
      %1413 = vmatprep.subr.bf16.mxu0 0
      %1414 = vmatpush2.bf16.msra.mxu0 0
      %1415 = vmatprep.subr.bf16.mxu0 0
      %1416 = vmatpush2.bf16.msra.mxu0 0
      %1417 = vmatprep.mubr.bf16.mxu0 0
      %1418 = vmatmul.mubr.bf16.gmra.mxu0 %v1383
      %v1419 = vpop.f32.mrf.mxu0
      %v1420 = vadd.f32 0.0, %v1419
      %v1421 = vpop.f32.mrf.mxu0
      %v1422 = vadd.f32 0.0, %v1421
      %v1423 = vpop.f32.mrf.mxu0
      %v1424 = vpop.f32.mrf.mxu0
      %1425 = vdwg.mxu0
      %v1426 = vadd.f32 %v1317, %v1420
      %v1427 = vadd.f32 %v1318, %v1422
      %v1430 = vcombine.low %v1380, %v1381
      %v1432 = vunpack.c.l.s4 1983009808
      %v1433 = vunpack.c.0.s8 %v1432
      %v1434 = vlaneseq
      %v1435 = vshrl.u32 %v1434, 7
      %v1436 = vsub.s32 %v1433, %v1435
      %v1437 = vrot.slane %v1430, %v1436
      %v1439 = vsub.f32 %v440, %v1437
      %v1440 = vmul.f32 %v1426, 1.442695
      %v1441 = vpow.pop %v1440
      %v1442 = vmul.f32 %v1427, 1.442695
      %v1443 = vpow.pop %v1442
      %v1446 = vcombine.low %v1441, %v1443
      %v1448 = vunpack.c.l.s4 1983009808
      %v1449 = vunpack.c.0.s8 %v1448
      %v1450 = vlaneseq
      %v1451 = vshrl.u32 %v1450, 7
      %v1452 = vsub.s32 %v1449, %v1451
      %v1453 = vrot.slane %v1446, %v1452
      %v1455 = vmul.f32 %v1439, %v1453
      %1456 = vst [vmem:[%s284] sm:$0xf] %v1455
      %vm1457 = vcmask 1041408
      %v1458 = vsel %vm1457, %v1426, 0.0
      %v1459 = vsel %vm1457, %v1427, 0.0
      %v1460 = vadd.f32 %v1458, %v1459
      %1461 = vadd.xlane.f32.xlu0 %v1460
      %v1462 = vpop.xlane.xlu0 %1461
      %v1463 = vrot.slane %v1462, 4
      %v1464 = vadd.f32 %v1462, %v1463
      %v1465 = vrot.slane %v1464, 2
      %v1466 = vadd.f32 %v1464, %v1465
      %v1467 = vrot.slane %v1466, 1
      %v1468 = vadd.f32 %v1466, %v1467
      %s1469 = vtos %v1468
      %v1470 = vstv %s1469
      %1471 = vst [vmem:[%s287] sm:$0x1] %v1470
      %p1472 = scmp.lt.s32.totalorder %s19, 1
      %s1473 = scalar_select %p1472, %s19, 1
      %s1474 = smul.addr %s1473, 2
      %s1475 = smul.addr %s1474, 2
      %s1476 = scalar_lea.vmem %s6, %s1475
      %p1477 = scmp.lt.s32.totalorder %s19, 1
      %s1478 = scalar_select %p1477, %s19, 1
      %s1479 = scalar_lea.vmem %s7, %s1478
      // Predicated region
      $region45: #{split_forward.1} parent=43 // pred_check
        %p1480 = pneg %p168
      $region46: #{split_forward.1} parent=43 // pred_check_branch
        %1482 = sbr.rel (%p1480) target = $region48
      $region47: #{split_forward.1} parent=43 // pred_region
        _
      $region48: #{split_forward.1} parent=43 // pred_fallthru
        _
      // Predicated region
      $region49: #{split_forward.1} parent=43 // pred_check
        %p1483 = pneg %p194
      $region50: #{split_forward.1} parent=43 // pred_check_branch
        %1485 = sbr.rel (%p1483) target = $region52
      $region51: #{split_forward.1} parent=43 // pred_region
        _
      $region52: #{split_forward.1} parent=43 // pred_fallthru
        _
    $region44: #{split_forward.1} parent=5 // pred_fallthru
      _
    %p1486 = scmp.le.s32.totalorder 2, %s14
    // Predicated region
    $region53: #{split_forward.1} parent=5 // pred_check
      %p1487 = pneg %p1486
    $region54: #{split_forward.1} parent=5 // pred_check_branch
      %1489 = sbr.rel (%p1487) target = $region56
    $region55: #{split_forward.1} parent=5 // pred_region
      %s1490 = ssub.s32 %s14, 2
      // Predicated region
      $region57: #{split_forward.1} parent=55 // pred_check
        %p1491 = pneg %p174
      $region58: #{split_forward.1} parent=55 // pred_check_branch
        %1493 = sbr.rel (%p1491) target = $region60
      $region59: #{split_forward.1} parent=55 // pred_region
        %p1494 = scmp.lt.s32.totalorder %s20, 1
        %s1495 = scalar_select %p1494, %s20, 1
        %s1496 = smul.addr %s1495, 2
        %s1497 = smul.addr %s1496, 2
        %s1498 = scalar_lea.vmem %s6, %s1497
      $region60: #{split_forward.1} parent=55 // pred_fallthru
        _
      // Predicated region
      $region61: #{split_forward.1} parent=55 // pred_check
        %p1499 = pneg %p200
      $region62: #{split_forward.1} parent=55 // pred_check_branch
        %1501 = sbr.rel (%p1499) target = $region64
      $region63: #{split_forward.1} parent=55 // pred_region
        %p1502 = scmp.lt.s32.totalorder %s20, 1
        %s1503 = scalar_select %p1502, %s20, 1
        %s1504 = scalar_lea.vmem %s7, %s1503
      $region64: #{split_forward.1} parent=55 // pred_fallthru
        _
    $region56: #{split_forward.1} parent=5 // pred_fallthru
      _
  $region6: #{split_forward.1} parent=0 // loop_footer
    %s18 = sadd.s32 1, %s14
  $region7: #{split_forward.1} parent=0 // loop_footer_branch
    %13 = sbr.rel target = $region3
  $region8: #{split_forward.1} parent=0 // loop_exit
    _

</llo_original>
